<compile_context>
chip_gen: v6e
topology: v6e:2x2x1
jax: 0.10.0
libtpu: 0.0.40
codegen_flags: <defaults>
</compile_context>

<pallas_src>
import jax
import jax.numpy as jnp
from jax.experimental import pallas as pl
from jax.experimental.pallas import tpu as pltpu

# ----------------------------- config (small) ------------------------------
B = 2          # batch
SQ = 8         # query (decoder) sequence length
SK = 8         # key/value (encoder) sequence length
D_MODEL = 32   # d_model
N_HEADS = 4    # n_heads
D_KV = 8       # key_value_proj_dim
INNER = N_HEADS * D_KV
LN_EPS = 1e-6

_NQ = B * SQ   # flattened query rows   (16)
_NK = B * SK   # flattened key rows     (16)


# ------------------------------ Pallas kernel ------------------------------
def _cross_attn_kernel(xkv_ref, small_ref, wqkv_ref, wo_ref, out_ref):
    # xkv_ref:   (B*SQ + B*SK, D)  rows [0:B*SQ] = hidden_states, rest = key_value_states
    # small_ref: (B*SQ + 1, D)     rows [0:B*SQ, 0:B*SK] = fused additive bias
    #                              (attention_mask + delete_gate + batch block-diag mask),
    #                              row B*SQ = layer-norm weight
    # wqkv_ref:  (3*H, D, D_KV)    head-leading stacked Wq/Wk/Wv
    # wo_ref:    (H, D_KV, D)      head-leading Wo row blocks
    x = xkv_ref[0:_NQ, :]                       # (B*Sq, D)   sublane offset 0
    kv = xkv_ref[_NQ:_NQ + _NK, :]              # (B*Sk, D)   sublane offset 16 (aligned)
    bias = small_ref[0:_NQ, 0:_NK]              # (B*Sq, B*Sk) lane offset 0, loaded once
    ln_w = small_ref[_NQ:_NQ + 1, :]            # (1, D)

    # --- T5LayerNorm (RMS norm, no mean subtraction, no bias), f32 ---
    var = jnp.mean(x * x, axis=-1, keepdims=True)                 # (B*Sq, 1)
    x_n = x * jax.lax.rsqrt(var + LN_EPS) * ln_w                  # (B*Sq, D)

    # --- per-head attention; all batches handled at once via block-diag bias ---
    acc = jnp.zeros((_NQ, D_MODEL), jnp.float32)
    for h in range(N_HEADS):
        # per-head projections (lane offset 0, no inner-dim slicing; T5: no 1/sqrt(d))
        q_h = jnp.dot(x_n, wqkv_ref[h],
                      preferred_element_type=jnp.float32)          # (B*Sq, dk)
        k_h = jnp.dot(kv, wqkv_ref[N_HEADS + h],
                      preferred_element_type=jnp.float32)          # (B*Sk, dk)
        v_h = jnp.dot(kv, wqkv_ref[2 * N_HEADS + h],
                      preferred_element_type=jnp.float32)          # (B*Sk, dk)

        # scores over all (query, key) pairs; cross-batch pairs carry -1e9 in bias
        s = jax.lax.dot_general(q_h, k_h, (((1,), (1,)), ((), ())),
                                preferred_element_type=jnp.float32)  # (B*Sq, B*Sk)
        s = s + bias

        # float32 softmax over the key axis (exact divide; SK is tiny)
        m = jnp.max(s, axis=-1, keepdims=True)
        e = jnp.exp(s - m)
        attn = e / jnp.sum(e, axis=-1, keepdims=True)              # (B*Sq, B*Sk)

        ctx_h = jnp.dot(attn, v_h,
                        preferred_element_type=jnp.float32)        # (B*Sq, dk)
        # fold the output projection into the head loop: ctx @ Wo == sum_h ctx_h @ Wo[h]
        acc = acc + jnp.dot(ctx_h, wo_ref[h],
                            preferred_element_type=jnp.float32)    # (B*Sq, D)

    # --- residual (dropout is identity in eval); single contiguous store ---
    out_ref[...] = x + acc


# --------------------------------- wrapper ---------------------------------
def mrt5_layer_cross_attention(hidden_states, key_value_states, attention_mask,
                               delete_gate_mask, ln_weight, wq, wk, wv, wo):
    # Fused per-key additive bias: extended attention mask + delete gate -> (B, SK).
    fused = attention_mask[:, 0, 0, :] + delete_gate_mask[:, :, 0]          # (B, SK)
    # Block-diagonal batch mask so the flattened (B*SQ, B*SK) attention never
    # crosses batch boundaries.
    q_batch = jnp.repeat(jnp.arange(B), SQ)                                  # (B*SQ,)
    k_batch = jnp.repeat(jnp.arange(B), SK)                                  # (B*SK,)
    block_mask = jnp.where(q_batch[:, None] == k_batch[None, :], 0.0, -1e9)  # (B*SQ,B*SK)
    full_bias = block_mask + fused.reshape(1, _NK)                           # (B*SQ,B*SK)

    # Pack small operands (sublane packing only -> in-kernel slices stay aligned).
    small = jnp.zeros((_NQ + 1, D_MODEL), jnp.float32)
    small = small.at[:_NQ, :_NK].set(full_bias)
    small = small.at[_NQ, :].set(ln_weight[0])

    # Pack activations: one (B*SQ + B*SK, D) slab.
    xkv = jnp.concatenate([hidden_states.reshape(_NQ, D_MODEL),
                           key_value_states.reshape(_NK, D_MODEL)], axis=0)

    # Head-leading weight layouts.
    wqkv = jnp.stack([wq, wk, wv], axis=0)                                   # (3, D, INNER)
    wqkv = wqkv.reshape(3, D_MODEL, N_HEADS, D_KV).transpose(0, 2, 1, 3)     # (3, H, D, dk)
    wqkv = wqkv.reshape(3 * N_HEADS, D_MODEL, D_KV)                          # (3H, D, dk)
    wo_h = wo.reshape(N_HEADS, D_KV, D_MODEL)                                # (H, dk, D)

    flat_out = pl.pallas_call(
        _cross_attn_kernel,
        out_shape=jax.ShapeDtypeStruct((_NQ, D_MODEL), jnp.float32),
        in_specs=[pl.BlockSpec(memory_space=pltpu.MemorySpace.VMEM)] * 4,
        out_specs=pl.BlockSpec(memory_space=pltpu.MemorySpace.VMEM),
    )(xkv, small, wqkv, wo_h)

    layer_output = flat_out.reshape(B, SQ, D_MODEL)

    # position_bias (has_relative_attention_bias=False) = zeros + attention_mask,
    # i.e. a pure broadcast of the mask; produced in the wrapper, not the kernel.
    # TODO(synk): at real sizes return the mask itself (lazy view) instead of
    # materializing B*H*SQ*SK redundant HBM bytes.
    position_bias = jnp.broadcast_to(
        attention_mask, (B, N_HEADS, SQ, SK)).astype(jnp.float32)
    return layer_output, position_bias


# ------------------------------ pure-JAX reference ------------------------------
def _reference(hidden_states, key_value_states, attention_mask,
               delete_gate_mask, ln_weight, wq, wk, wv, wo):
    var = jnp.mean(hidden_states ** 2, axis=-1, keepdims=True)
    x_n = hidden_states * jax.lax.rsqrt(var + LN_EPS) * ln_weight[0]
    q = (x_n @ wq).reshape(B, SQ, N_HEADS, D_KV).transpose(0, 2, 1, 3)
    k = (key_value_states @ wk).reshape(B, SK, N_HEADS, D_KV).transpose(0, 2, 1, 3)
    v = (key_value_states @ wv).reshape(B, SK, N_HEADS, D_KV).transpose(0, 2, 1, 3)
    scores = jnp.einsum('bhqd,bhkd->bhqk', q, k)
    pos_bias = jnp.zeros((1, N_HEADS, SQ, SK)) + attention_mask   # -> (B,H,Sq,Sk)
    scores = scores + pos_bias
    scores = scores + delete_gate_mask[:, None, None, :, 0]
    attn = jax.nn.softmax(scores, axis=-1)
    ctx = jnp.einsum('bhqk,bhkd->bhqd', attn, v).transpose(0, 2, 1, 3).reshape(B, SQ, INNER)
    out = hidden_states + ctx @ wo
    return out, pos_bias


# ---------------------------------- main ----------------------------------
if __name__ == "__main__":
    key = jax.random.PRNGKey(0)
    ks = jax.random.split(key, 8)

    hidden_states = jax.random.normal(ks[0], (B, SQ, D_MODEL), jnp.float32)
    key_value_states = jax.random.normal(ks[1], (B, SK, D_MODEL), jnp.float32)
    # additive extended attention mask: last 2 key positions of batch 1 masked
    attention_mask = jnp.zeros((B, 1, 1, SK), jnp.float32)
    attention_mask = attention_mask.at[1, 0, 0, -2:].set(-1e9)
    # delete gate mask (additive, typically <= 0)
    delete_gate_mask = -jnp.abs(
        jax.random.normal(ks[2], (B, SK, 1), jnp.float32)) * 0.5

    # parameters (deterministic synthetic init)
    ln_weight = jnp.ones((1, D_MODEL), jnp.float32)
    wq = jax.random.normal(ks[3], (D_MODEL, INNER), jnp.float32) * 0.05
    wk = jax.random.normal(ks[4], (D_MODEL, INNER), jnp.float32) * 0.05
    wv = jax.random.normal(ks[5], (D_MODEL, INNER), jnp.float32) * 0.05
    wo = jax.random.normal(ks[6], (INNER, D_MODEL), jnp.float32) * 0.05

    layer_out, pos_bias = jax.block_until_ready(
        mrt5_layer_cross_attention(hidden_states, key_value_states,
                                   attention_mask, delete_gate_mask,
                                   ln_weight, wq, wk, wv, wo))

    ref_out, ref_pb = _reference(hidden_states, key_value_states,
                                 attention_mask, delete_gate_mask,
                                 ln_weight, wq, wk, wv, wo)
    assert jnp.allclose(layer_out, ref_out, atol=1e-3, rtol=1e-3), "layer_output mismatch"
    assert jnp.allclose(pos_bias, jnp.broadcast_to(ref_pb, (B, N_HEADS, SQ, SK)),
                        atol=1e-5), "position_bias mismatch"

    print("KERNEL_OK")
</pallas_src>

<mosaic_0001>
module attributes {stable_mosaic.version = 11 : i64} {
  func.func @_cross_attn_kernel(%arg0: memref<32x32xf32, #tpu.memory_space<vmem>>, %arg1: memref<17x32xf32, #tpu.memory_space<vmem>>, %arg2: memref<12x32x8xf32, #tpu.memory_space<vmem>>, %arg3: memref<4x8x32xf32, #tpu.memory_space<vmem>>, %arg4: memref<16x32xf32, #tpu.memory_space<vmem>>) attributes {dimension_semantics = [], scalar_prefetch = 0 : i64, scratch_operands = 0 : i64, tpu.core_type = #tpu.core_type<tc>} {
    %c0 = arith.constant 0 : index
    %c0_0 = arith.constant 0 : index
    %0 = vector.load %arg0[%c0, %c0_0] : memref<32x32xf32, #tpu.memory_space<vmem>>, vector<16x32xf32>
    %c16 = arith.constant 16 : index
    %c0_1 = arith.constant 0 : index
    %1 = vector.load %arg0[%c16, %c0_1] : memref<32x32xf32, #tpu.memory_space<vmem>>, vector<16x32xf32>
    %c0_2 = arith.constant 0 : index
    %c0_3 = arith.constant 0 : index
    %2 = vector.load %arg1[%c0_2, %c0_3] : memref<17x32xf32, #tpu.memory_space<vmem>>, vector<16x16xf32>
    %c16_4 = arith.constant 16 : index
    %c0_5 = arith.constant 0 : index
    %3 = vector.load %arg1[%c16_4, %c0_5] : memref<17x32xf32, #tpu.memory_space<vmem>>, vector<1x32xf32>
    %4 = arith.mulf %0, %0 : vector<16x32xf32>
    %cst = arith.constant dense<0.000000e+00> : vector<16xf32>
    %5 = vector.multi_reduction <add>, %4, %cst [1] : vector<16x32xf32> to vector<16xf32>
    %6 = vector.shape_cast %5 : vector<16xf32> to vector<16x1xf32>
    %cst_6 = arith.constant 3.200000e+01 : f32
    %7 = vector.broadcast %cst_6 : f32 to vector<16x1xf32>
    %8 = arith.divf %6, %7 : vector<16x1xf32>
    %cst_7 = arith.constant 9.99999997E-7 : f32
    %9 = vector.broadcast %cst_7 : f32 to vector<16x1xf32>
    %10 = arith.addf %8, %9 : vector<16x1xf32>
    %11 = math.rsqrt %10 : vector<16x1xf32>
    %12 = vector.broadcast %11 : vector<16x1xf32> to vector<16x32xf32>
    %13 = arith.mulf %0, %12 : vector<16x32xf32>
    %14 = vector.broadcast %3 : vector<1x32xf32> to vector<16x32xf32>
    %15 = arith.mulf %13, %14 : vector<16x32xf32>
    %cst_8 = arith.constant 0.000000e+00 : f32
    %16 = vector.broadcast %cst_8 : f32 to vector<16x32xf32>
    %c0_9 = arith.constant 0 : index
    %c0_10 = arith.constant 0 : index
    %c0_11 = arith.constant 0 : index
    %17 = vector.load %arg2[%c0_9, %c0_10, %c0_11] : memref<12x32x8xf32, #tpu.memory_space<vmem>>, vector<1x32x8xf32>
    %18 = vector.shape_cast %17 : vector<1x32x8xf32> to vector<32x8xf32>
    %cst_12 = arith.constant dense<0.000000e+00> : vector<16x8xf32>
    %19 = tpu.matmul %15, %18, %cst_12 {dimension_numbers = #tpu.dot_dimension_numbers<[1], [0], [0], [1], [0, 0, 1, 1], [], []>} : vector<16x32xf32>, vector<32x8xf32>, vector<16x8xf32> -> vector<16x8xf32>
    %c4 = arith.constant 4 : index
    %c0_13 = arith.constant 0 : index
    %c0_14 = arith.constant 0 : index
    %20 = vector.load %arg2[%c4, %c0_13, %c0_14] : memref<12x32x8xf32, #tpu.memory_space<vmem>>, vector<1x32x8xf32>
    %21 = vector.shape_cast %20 : vector<1x32x8xf32> to vector<32x8xf32>
    %cst_15 = arith.constant dense<0.000000e+00> : vector<16x8xf32>
    %22 = tpu.matmul %1, %21, %cst_15 {dimension_numbers = #tpu.dot_dimension_numbers<[1], [0], [0], [1], [0, 0, 1, 1], [], []>} : vector<16x32xf32>, vector<32x8xf32>, vector<16x8xf32> -> vector<16x8xf32>
    %c8 = arith.constant 8 : index
    %c0_16 = arith.constant 0 : index
    %c0_17 = arith.constant 0 : index
    %23 = vector.load %arg2[%c8, %c0_16, %c0_17] : memref<12x32x8xf32, #tpu.memory_space<vmem>>, vector<1x32x8xf32>
    %24 = vector.shape_cast %23 : vector<1x32x8xf32> to vector<32x8xf32>
    %cst_18 = arith.constant dense<0.000000e+00> : vector<16x8xf32>
    %25 = tpu.matmul %1, %24, %cst_18 {dimension_numbers = #tpu.dot_dimension_numbers<[1], [0], [0], [1], [0, 0, 1, 1], [], []>} : vector<16x32xf32>, vector<32x8xf32>, vector<16x8xf32> -> vector<16x8xf32>
    %cst_19 = arith.constant dense<0.000000e+00> : vector<16x16xf32>
    %26 = tpu.matmul %19, %22, %cst_19 {dimension_numbers = #tpu.dot_dimension_numbers<[1], [1], [0], [0], [0, 0, 1, 0], [], []>} : vector<16x8xf32>, vector<16x8xf32>, vector<16x16xf32> -> vector<16x16xf32>
    %27 = arith.addf %26, %2 : vector<16x16xf32>
    %cst_20 = arith.constant dense<0xFF800000> : vector<16xf32>
    %28 = vector.multi_reduction <maximumf>, %27, %cst_20 [1] : vector<16x16xf32> to vector<16xf32>
    %29 = vector.shape_cast %28 : vector<16xf32> to vector<16x1xf32>
    %30 = vector.broadcast %29 : vector<16x1xf32> to vector<16x16xf32>
    %31 = arith.subf %27, %30 : vector<16x16xf32>
    %32 = math.exp %31 : vector<16x16xf32>
    %cst_21 = arith.constant dense<0.000000e+00> : vector<16xf32>
    %33 = vector.multi_reduction <add>, %32, %cst_21 [1] : vector<16x16xf32> to vector<16xf32>
    %34 = vector.shape_cast %33 : vector<16xf32> to vector<16x1xf32>
    %35 = vector.broadcast %34 : vector<16x1xf32> to vector<16x16xf32>
    %36 = arith.divf %32, %35 : vector<16x16xf32>
    %cst_22 = arith.constant dense<0.000000e+00> : vector<16x8xf32>
    %37 = tpu.matmul %36, %25, %cst_22 {dimension_numbers = #tpu.dot_dimension_numbers<[1], [0], [0], [1], [0, 0, 1, 1], [], []>} : vector<16x16xf32>, vector<16x8xf32>, vector<16x8xf32> -> vector<16x8xf32>
    %c0_23 = arith.constant 0 : index
    %c0_24 = arith.constant 0 : index
    %c0_25 = arith.constant 0 : index
    %38 = vector.load %arg3[%c0_23, %c0_24, %c0_25] : memref<4x8x32xf32, #tpu.memory_space<vmem>>, vector<1x8x32xf32>
    %39 = vector.shape_cast %38 : vector<1x8x32xf32> to vector<8x32xf32>
    %cst_26 = arith.constant dense<0.000000e+00> : vector<16x32xf32>
    %40 = tpu.matmul %37, %39, %cst_26 {dimension_numbers = #tpu.dot_dimension_numbers<[1], [0], [0], [1], [0, 0, 1, 1], [], []>} : vector<16x8xf32>, vector<8x32xf32>, vector<16x32xf32> -> vector<16x32xf32>
    %41 = arith.addf %16, %40 : vector<16x32xf32>
    %c1 = arith.constant 1 : index
    %c0_27 = arith.constant 0 : index
    %c0_28 = arith.constant 0 : index
    %42 = vector.load %arg2[%c1, %c0_27, %c0_28] : memref<12x32x8xf32, #tpu.memory_space<vmem>>, vector<1x32x8xf32>
    %43 = vector.shape_cast %42 : vector<1x32x8xf32> to vector<32x8xf32>
    %cst_29 = arith.constant dense<0.000000e+00> : vector<16x8xf32>
    %44 = tpu.matmul %15, %43, %cst_29 {dimension_numbers = #tpu.dot_dimension_numbers<[1], [0], [0], [1], [0, 0, 1, 1], [], []>} : vector<16x32xf32>, vector<32x8xf32>, vector<16x8xf32> -> vector<16x8xf32>
    %c5 = arith.constant 5 : index
    %c0_30 = arith.constant 0 : index
    %c0_31 = arith.constant 0 : index
    %45 = vector.load %arg2[%c5, %c0_30, %c0_31] : memref<12x32x8xf32, #tpu.memory_space<vmem>>, vector<1x32x8xf32>
    %46 = vector.shape_cast %45 : vector<1x32x8xf32> to vector<32x8xf32>
    %cst_32 = arith.constant dense<0.000000e+00> : vector<16x8xf32>
    %47 = tpu.matmul %1, %46, %cst_32 {dimension_numbers = #tpu.dot_dimension_numbers<[1], [0], [0], [1], [0, 0, 1, 1], [], []>} : vector<16x32xf32>, vector<32x8xf32>, vector<16x8xf32> -> vector<16x8xf32>
    %c9 = arith.constant 9 : index
    %c0_33 = arith.constant 0 : index
    %c0_34 = arith.constant 0 : index
    %48 = vector.load %arg2[%c9, %c0_33, %c0_34] : memref<12x32x8xf32, #tpu.memory_space<vmem>>, vector<1x32x8xf32>
    %49 = vector.shape_cast %48 : vector<1x32x8xf32> to vector<32x8xf32>
    %cst_35 = arith.constant dense<0.000000e+00> : vector<16x8xf32>
    %50 = tpu.matmul %1, %49, %cst_35 {dimension_numbers = #tpu.dot_dimension_numbers<[1], [0], [0], [1], [0, 0, 1, 1], [], []>} : vector<16x32xf32>, vector<32x8xf32>, vector<16x8xf32> -> vector<16x8xf32>
    %cst_36 = arith.constant dense<0.000000e+00> : vector<16x16xf32>
    %51 = tpu.matmul %44, %47, %cst_36 {dimension_numbers = #tpu.dot_dimension_numbers<[1], [1], [0], [0], [0, 0, 1, 0], [], []>} : vector<16x8xf32>, vector<16x8xf32>, vector<16x16xf32> -> vector<16x16xf32>
    %52 = arith.addf %51, %2 : vector<16x16xf32>
    %cst_37 = arith.constant dense<0xFF800000> : vector<16xf32>
    %53 = vector.multi_reduction <maximumf>, %52, %cst_37 [1] : vector<16x16xf32> to vector<16xf32>
    %54 = vector.shape_cast %53 : vector<16xf32> to vector<16x1xf32>
    %55 = vector.broadcast %54 : vector<16x1xf32> to vector<16x16xf32>
    %56 = arith.subf %52, %55 : vector<16x16xf32>
    %57 = math.exp %56 : vector<16x16xf32>
    %cst_38 = arith.constant dense<0.000000e+00> : vector<16xf32>
    %58 = vector.multi_reduction <add>, %57, %cst_38 [1] : vector<16x16xf32> to vector<16xf32>
    %59 = vector.shape_cast %58 : vector<16xf32> to vector<16x1xf32>
    %60 = vector.broadcast %59 : vector<16x1xf32> to vector<16x16xf32>
    %61 = arith.divf %57, %60 : vector<16x16xf32>
    %cst_39 = arith.constant dense<0.000000e+00> : vector<16x8xf32>
    %62 = tpu.matmul %61, %50, %cst_39 {dimension_numbers = #tpu.dot_dimension_numbers<[1], [0], [0], [1], [0, 0, 1, 1], [], []>} : vector<16x16xf32>, vector<16x8xf32>, vector<16x8xf32> -> vector<16x8xf32>
    %c1_40 = arith.constant 1 : index
    %c0_41 = arith.constant 0 : index
    %c0_42 = arith.constant 0 : index
    %63 = vector.load %arg3[%c1_40, %c0_41, %c0_42] : memref<4x8x32xf32, #tpu.memory_space<vmem>>, vector<1x8x32xf32>
    %64 = vector.shape_cast %63 : vector<1x8x32xf32> to vector<8x32xf32>
    %cst_43 = arith.constant dense<0.000000e+00> : vector<16x32xf32>
    %65 = tpu.matmul %62, %64, %cst_43 {dimension_numbers = #tpu.dot_dimension_numbers<[1], [0], [0], [1], [0, 0, 1, 1], [], []>} : vector<16x8xf32>, vector<8x32xf32>, vector<16x32xf32> -> vector<16x32xf32>
    %66 = arith.addf %41, %65 : vector<16x32xf32>
    %c2 = arith.constant 2 : index
    %c0_44 = arith.constant 0 : index
    %c0_45 = arith.constant 0 : index
    %67 = vector.load %arg2[%c2, %c0_44, %c0_45] : memref<12x32x8xf32, #tpu.memory_space<vmem>>, vector<1x32x8xf32>
    %68 = vector.shape_cast %67 : vector<1x32x8xf32> to vector<32x8xf32>
    %cst_46 = arith.constant dense<0.000000e+00> : vector<16x8xf32>
    %69 = tpu.matmul %15, %68, %cst_46 {dimension_numbers = #tpu.dot_dimension_numbers<[1], [0], [0], [1], [0, 0, 1, 1], [], []>} : vector<16x32xf32>, vector<32x8xf32>, vector<16x8xf32> -> vector<16x8xf32>
    %c6 = arith.constant 6 : index
    %c0_47 = arith.constant 0 : index
    %c0_48 = arith.constant 0 : index
    %70 = vector.load %arg2[%c6, %c0_47, %c0_48] : memref<12x32x8xf32, #tpu.memory_space<vmem>>, vector<1x32x8xf32>
    %71 = vector.shape_cast %70 : vector<1x32x8xf32> to vector<32x8xf32>
    %cst_49 = arith.constant dense<0.000000e+00> : vector<16x8xf32>
    %72 = tpu.matmul %1, %71, %cst_49 {dimension_numbers = #tpu.dot_dimension_numbers<[1], [0], [0], [1], [0, 0, 1, 1], [], []>} : vector<16x32xf32>, vector<32x8xf32>, vector<16x8xf32> -> vector<16x8xf32>
    %c10 = arith.constant 10 : index
    %c0_50 = arith.constant 0 : index
    %c0_51 = arith.constant 0 : index
    %73 = vector.load %arg2[%c10, %c0_50, %c0_51] : memref<12x32x8xf32, #tpu.memory_space<vmem>>, vector<1x32x8xf32>
    %74 = vector.shape_cast %73 : vector<1x32x8xf32> to vector<32x8xf32>
    %cst_52 = arith.constant dense<0.000000e+00> : vector<16x8xf32>
    %75 = tpu.matmul %1, %74, %cst_52 {dimension_numbers = #tpu.dot_dimension_numbers<[1], [0], [0], [1], [0, 0, 1, 1], [], []>} : vector<16x32xf32>, vector<32x8xf32>, vector<16x8xf32> -> vector<16x8xf32>
    %cst_53 = arith.constant dense<0.000000e+00> : vector<16x16xf32>
    %76 = tpu.matmul %69, %72, %cst_53 {dimension_numbers = #tpu.dot_dimension_numbers<[1], [1], [0], [0], [0, 0, 1, 0], [], []>} : vector<16x8xf32>, vector<16x8xf32>, vector<16x16xf32> -> vector<16x16xf32>
    %77 = arith.addf %76, %2 : vector<16x16xf32>
    %cst_54 = arith.constant dense<0xFF800000> : vector<16xf32>
    %78 = vector.multi_reduction <maximumf>, %77, %cst_54 [1] : vector<16x16xf32> to vector<16xf32>
    %79 = vector.shape_cast %78 : vector<16xf32> to vector<16x1xf32>
    %80 = vector.broadcast %79 : vector<16x1xf32> to vector<16x16xf32>
    %81 = arith.subf %77, %80 : vector<16x16xf32>
    %82 = math.exp %81 : vector<16x16xf32>
    %cst_55 = arith.constant dense<0.000000e+00> : vector<16xf32>
    %83 = vector.multi_reduction <add>, %82, %cst_55 [1] : vector<16x16xf32> to vector<16xf32>
    %84 = vector.shape_cast %83 : vector<16xf32> to vector<16x1xf32>
    %85 = vector.broadcast %84 : vector<16x1xf32> to vector<16x16xf32>
    %86 = arith.divf %82, %85 : vector<16x16xf32>
    %cst_56 = arith.constant dense<0.000000e+00> : vector<16x8xf32>
    %87 = tpu.matmul %86, %75, %cst_56 {dimension_numbers = #tpu.dot_dimension_numbers<[1], [0], [0], [1], [0, 0, 1, 1], [], []>} : vector<16x16xf32>, vector<16x8xf32>, vector<16x8xf32> -> vector<16x8xf32>
    %c2_57 = arith.constant 2 : index
    %c0_58 = arith.constant 0 : index
    %c0_59 = arith.constant 0 : index
    %88 = vector.load %arg3[%c2_57, %c0_58, %c0_59] : memref<4x8x32xf32, #tpu.memory_space<vmem>>, vector<1x8x32xf32>
    %89 = vector.shape_cast %88 : vector<1x8x32xf32> to vector<8x32xf32>
    %cst_60 = arith.constant dense<0.000000e+00> : vector<16x32xf32>
    %90 = tpu.matmul %87, %89, %cst_60 {dimension_numbers = #tpu.dot_dimension_numbers<[1], [0], [0], [1], [0, 0, 1, 1], [], []>} : vector<16x8xf32>, vector<8x32xf32>, vector<16x32xf32> -> vector<16x32xf32>
    %91 = arith.addf %66, %90 : vector<16x32xf32>
    %c3 = arith.constant 3 : index
    %c0_61 = arith.constant 0 : index
    %c0_62 = arith.constant 0 : index
    %92 = vector.load %arg2[%c3, %c0_61, %c0_62] : memref<12x32x8xf32, #tpu.memory_space<vmem>>, vector<1x32x8xf32>
    %93 = vector.shape_cast %92 : vector<1x32x8xf32> to vector<32x8xf32>
    %cst_63 = arith.constant dense<0.000000e+00> : vector<16x8xf32>
    %94 = tpu.matmul %15, %93, %cst_63 {dimension_numbers = #tpu.dot_dimension_numbers<[1], [0], [0], [1], [0, 0, 1, 1], [], []>} : vector<16x32xf32>, vector<32x8xf32>, vector<16x8xf32> -> vector<16x8xf32>
    %c7 = arith.constant 7 : index
    %c0_64 = arith.constant 0 : index
    %c0_65 = arith.constant 0 : index
    %95 = vector.load %arg2[%c7, %c0_64, %c0_65] : memref<12x32x8xf32, #tpu.memory_space<vmem>>, vector<1x32x8xf32>
    %96 = vector.shape_cast %95 : vector<1x32x8xf32> to vector<32x8xf32>
    %cst_66 = arith.constant dense<0.000000e+00> : vector<16x8xf32>
    %97 = tpu.matmul %1, %96, %cst_66 {dimension_numbers = #tpu.dot_dimension_numbers<[1], [0], [0], [1], [0, 0, 1, 1], [], []>} : vector<16x32xf32>, vector<32x8xf32>, vector<16x8xf32> -> vector<16x8xf32>
    %c11 = arith.constant 11 : index
    %c0_67 = arith.constant 0 : index
    %c0_68 = arith.constant 0 : index
    %98 = vector.load %arg2[%c11, %c0_67, %c0_68] : memref<12x32x8xf32, #tpu.memory_space<vmem>>, vector<1x32x8xf32>
    %99 = vector.shape_cast %98 : vector<1x32x8xf32> to vector<32x8xf32>
    %cst_69 = arith.constant dense<0.000000e+00> : vector<16x8xf32>
    %100 = tpu.matmul %1, %99, %cst_69 {dimension_numbers = #tpu.dot_dimension_numbers<[1], [0], [0], [1], [0, 0, 1, 1], [], []>} : vector<16x32xf32>, vector<32x8xf32>, vector<16x8xf32> -> vector<16x8xf32>
    %cst_70 = arith.constant dense<0.000000e+00> : vector<16x16xf32>
    %101 = tpu.matmul %94, %97, %cst_70 {dimension_numbers = #tpu.dot_dimension_numbers<[1], [1], [0], [0], [0, 0, 1, 0], [], []>} : vector<16x8xf32>, vector<16x8xf32>, vector<16x16xf32> -> vector<16x16xf32>
    %102 = arith.addf %101, %2 : vector<16x16xf32>
    %cst_71 = arith.constant dense<0xFF800000> : vector<16xf32>
    %103 = vector.multi_reduction <maximumf>, %102, %cst_71 [1] : vector<16x16xf32> to vector<16xf32>
    %104 = vector.shape_cast %103 : vector<16xf32> to vector<16x1xf32>
    %105 = vector.broadcast %104 : vector<16x1xf32> to vector<16x16xf32>
    %106 = arith.subf %102, %105 : vector<16x16xf32>
    %107 = math.exp %106 : vector<16x16xf32>
    %cst_72 = arith.constant dense<0.000000e+00> : vector<16xf32>
    %108 = vector.multi_reduction <add>, %107, %cst_72 [1] : vector<16x16xf32> to vector<16xf32>
    %109 = vector.shape_cast %108 : vector<16xf32> to vector<16x1xf32>
    %110 = vector.broadcast %109 : vector<16x1xf32> to vector<16x16xf32>
    %111 = arith.divf %107, %110 : vector<16x16xf32>
    %cst_73 = arith.constant dense<0.000000e+00> : vector<16x8xf32>
    %112 = tpu.matmul %111, %100, %cst_73 {dimension_numbers = #tpu.dot_dimension_numbers<[1], [0], [0], [1], [0, 0, 1, 1], [], []>} : vector<16x16xf32>, vector<16x8xf32>, vector<16x8xf32> -> vector<16x8xf32>
    %c3_74 = arith.constant 3 : index
    %c0_75 = arith.constant 0 : index
    %c0_76 = arith.constant 0 : index
    %113 = vector.load %arg3[%c3_74, %c0_75, %c0_76] : memref<4x8x32xf32, #tpu.memory_space<vmem>>, vector<1x8x32xf32>
    %114 = vector.shape_cast %113 : vector<1x8x32xf32> to vector<8x32xf32>
    %cst_77 = arith.constant dense<0.000000e+00> : vector<16x32xf32>
    %115 = tpu.matmul %112, %114, %cst_77 {dimension_numbers = #tpu.dot_dimension_numbers<[1], [0], [0], [1], [0, 0, 1, 1], [], []>} : vector<16x8xf32>, vector<8x32xf32>, vector<16x32xf32> -> vector<16x32xf32>
    %116 = arith.addf %91, %115 : vector<16x32xf32>
    %117 = arith.addf %0, %116 : vector<16x32xf32>
    %c0_78 = arith.constant 0 : index
    %c0_79 = arith.constant 0 : index
    %118 = vector.load %arg4[%c0_78, %c0_79] : memref<16x32xf32, #tpu.memory_space<vmem>>, vector<16x32xf32>
    tpu.vector_store %arg4[%c0_78, %c0_79], %117 {strides = array<i32>} : memref<16x32xf32, #tpu.memory_space<vmem>>, vector<16x32xf32>,
    return
  }
}

</mosaic_0001>

<llo_original>
// kernel: tpu_custom_call.1
$region0: #{tpu_custom_call.1}
  #allocation0 [shape = 'u32[]', space=smem, size = 0x4, offset = 0x4, fixed_abs, tag = 'smem constant byte address 0x4 - core index']
  #allocation1 [shape = 'u32[144,128]{1,0:T(1,128)}', space=vmem, size = 0x12000, scoped, tag = 'internal scratch']
  %s0 = inlined_call_operand.vmem [shape: f32[32,32], index: 0, kind: input, shape index: {}]
  %s1 = inlined_call_operand.vmem [shape: f32[17,32], index: 1, kind: input, shape index: {}]
  %s2 = inlined_call_operand.vmem [shape: f32[12,32,8], index: 2, kind: input, shape index: {}]
  %s3 = inlined_call_operand.vmem [shape: f32[4,8,32], index: 3, kind: input, shape index: {}]
  %s4 = inlined_call_operand.hbm [shape: f32[16,32], index: 4, kind: output, shape index: {}]
  %s5 = sld [smem:[#allocation0]]
  $region26: #{tpu_custom_call.1} parent=0
    _
  %s7 = ssub.s32 1, %s5
  %s8 = scalar_select 0, %s7, %s5
  $region1: #{tpu_custom_call.1} parent=0
    #allocation2 [shape = 'u8[8192]{0}', space=vmem, size = 0x2000, scoped, tag = 'output window, operand 0, single buffered']
    #allocation3 [shape = 's32[1]{0}', space=sflag, size = 0x4, scoped, tag = 'scoped memory for tpu_custom_call.1']
    %9 = vsyncpa [#allocation3], 0
    // Predicated region
    $region2: #{tpu_custom_call.1} parent=1 // pred_check
      _
    $region3: #{tpu_custom_call.1} parent=1 // pred_check_branch
      %11 = sbr.rel (0) target = $region5
    $region4: #{tpu_custom_call.1} parent=1 // pred_region
      _
    $region5: #{tpu_custom_call.1} parent=1 // pred_fallthru
      _
    // Predicated region
    $region6: #{tpu_custom_call.1} parent=1 // pred_check
      _
    $region7: #{tpu_custom_call.1} parent=1 // pred_check_branch
      %13 = sbr.rel (0) target = $region9
    $region8: #{tpu_custom_call.1} parent=1 // pred_region
      _
    $region9: #{tpu_custom_call.1} parent=1 // pred_fallthru
      _
    // Predicated region
    $region10: #{tpu_custom_call.1} parent=1 // pred_check
      _
    $region11: #{tpu_custom_call.1} parent=1 // pred_check_branch
      %15 = sbr.rel (0) target = $region13
    $region12: #{tpu_custom_call.1} parent=1 // pred_region
      _
    $region13: #{tpu_custom_call.1} parent=1 // pred_fallthru
      _
    // Predicated region
    $region14: #{tpu_custom_call.1} parent=1 // pred_check
      _
    $region15: #{tpu_custom_call.1} parent=1 // pred_check_branch
      %17 = sbr.rel (0) target = $region17
    $region16: #{tpu_custom_call.1} parent=1 // pred_region
      _
    $region17: #{tpu_custom_call.1} parent=1 // pred_fallthru
      _
    %v18 = vld [vmem:[%s0] sm:$0xff]
    %v19 = vld [vmem:[%s0 + $0x8] sm:$0xff]
    %v20 = vld [vmem:[%s0 + $0x10] sm:$0xff]
    %v21 = vld [vmem:[%s0 + $0x18] sm:$0xff]
    %v22 = vld [vmem:[%s1] sm:$0xff]
    %v23 = vld [vmem:[%s1 + $0x8] sm:$0xff]
    %v24 = vld [vmem:[%s1 + $0x10] sm:$0x1]
    %v25 = vmul.f32 %v18, %v18
    %v26 = vmul.f32 %v19, %v19
    %vm27 = vcmask 261120
    %v28 = vsel %vm27, %v25, 0.0
    %29 = vadd.xlane.f32.xlu0 %v28
    %v30 = vpop.xlane.xlu0 %29
    %v31 = vsel %vm27, %v26, 0.0
    %32 = vadd.xlane.f32.xlu0 %v31
    %v33 = vpop.xlane.xlu0 %32
    %v34 = vrcp.pop 32.0
    %v35 = vmul.f32 %v30, %v34
    %v36 = vmul.f32 %v33, %v34
    %v37 = vadd.f32 %v35, 1e-06
    %v38 = vadd.f32 %v36, 1e-06
    %v39 = vrsqrt.pop %v37
    %v40 = vrsqrt.pop %v38
    %v41 = vmul.f32 %v18, %v39
    %v42 = vmul.f32 %v19, %v40
    %v43 = vlaneseq
    %v44 = vshrl.u32 %v43, 7
    %v45 = vsub.s32 0, %v44
    %v46 = vrot.slane %v24, %v45
    %v47 = vmul.f32 %v41, %v46
    %v48 = vmul.f32 %v42, %v46
    %v49 = vld [vmem:[%s2] sm:$0xff]
    %v50 = vld [vmem:[%s2 + $0x8] sm:$0xff]
    %v51 = vld [vmem:[%s2 + $0x10] sm:$0xff]
    %v52 = vld [vmem:[%s2 + $0x18] sm:$0xff]
    %v54 = vsel %vm27, %v47, 0
    %v57 = vsel %vm27, %v48, 0
    %59 = vmatprep.subr.mxu0 0.0
    %60 = vmatpush1.msra.mxu0 0.0
    %61 = vmatprep.subr.mxu0 0.0
    %62 = vmatpush1.msra.mxu0 0.0
    %63 = vmatprep.subr.mxu0 0.0
    %64 = vmatpush1.msra.mxu0 0.0
    %65 = vmatprep.subr.mxu0 0.0
    %66 = vmatpush1.msra.mxu0 0.0
    %67 = vmatprep.subr.mxu0 0.0
    %68 = vmatpush1.msra.mxu0 0.0
    %69 = vmatprep.subr.mxu0 0.0
    %70 = vmatpush1.msra.mxu0 0.0
    %71 = vmatprep.subr.mxu0 0.0
    %72 = vmatpush1.msra.mxu0 0.0
    %73 = vmatprep.subr.mxu0 0.0
    %74 = vmatpush1.msra.mxu0 0.0
    %75 = vmatprep.subr.mxu0 0.0
    %76 = vmatpush1.msra.mxu0 0.0
    %77 = vmatprep.subr.mxu0 0.0
    %78 = vmatpush1.msra.mxu0 0.0
    %79 = vmatprep.subr.mxu0 0.0
    %80 = vmatpush1.msra.mxu0 0.0
    %81 = vmatprep.subr.mxu0 0.0
    %82 = vmatpush1.msra.mxu0 0.0
    %83 = vmatprep.subr.mxu0 0.0
    %84 = vmatpush1.msra.mxu0 %v52
    %85 = vmatprep.subr.mxu0 0.0
    %86 = vmatpush1.msra.mxu0 %v51
    %87 = vmatprep.subr.mxu0 0.0
    %88 = vmatpush1.msra.mxu0 %v50
    %89 = vmatprep.subr.mxu0 0.0
    %90 = vmatpush1.msra.mxu0 %v49
    %91 = vmatprep.subr.mxu0 0.0
    %92 = vmatpush2.msra.mxu0 0.0
    %93 = vmatprep.subr.mxu0 0.0
    %94 = vmatpush2.msra.mxu0 0.0
    %95 = vmatprep.subr.mxu0 0.0
    %96 = vmatpush2.msra.mxu0 0.0
    %97 = vmatprep.subr.mxu0 0.0
    %98 = vmatpush2.msra.mxu0 0.0
    %99 = vmatprep.subr.mxu0 0.0
    %100 = vmatpush2.msra.mxu0 0.0
    %101 = vmatprep.subr.mxu0 0.0
    %102 = vmatpush2.msra.mxu0 0.0
    %103 = vmatprep.subr.mxu0 0.0
    %104 = vmatpush2.msra.mxu0 0.0
    %105 = vmatprep.subr.mxu0 0.0
    %106 = vmatpush2.msra.mxu0 0.0
    %107 = vmatprep.subr.mxu0 0.0
    %108 = vmatpush2.msra.mxu0 0.0
    %109 = vmatprep.subr.mxu0 0.0
    %110 = vmatpush2.msra.mxu0 0.0
    %111 = vmatprep.subr.mxu0 0.0
    %112 = vmatpush2.msra.mxu0 0.0
    %113 = vmatprep.subr.mxu0 0.0
    %114 = vmatpush2.msra.mxu0 0.0
    %115 = vmatprep.subr.mxu0 0.0
    %116 = vmatpush2.msra.mxu0 0.0
    %117 = vmatprep.subr.mxu0 0.0
    %118 = vmatpush2.msra.mxu0 0.0
    %119 = vmatprep.subr.mxu0 0.0
    %120 = vmatpush2.msra.mxu0 0.0
    %121 = vmatprep.subr.mxu0 0.0
    %122 = vmatpush2.msra.mxu0 0.0
    %123 = vmatprep.mubr.f32.mxu0 0.0
    %124 = vmatmul.mubr.f32.gmra.mxu0 %v54
    %v125 = vpop.f32.mrf.mxu0
    %v126 = vadd.f32 0.0, %v125
    %v127 = vpop.f32.mrf.mxu0
    %128 = vmatprep.mubr.f32.mxu0 0.0
    %129 = vmatmul.mubr.f32.gmra.mxu0 %v57
    %v130 = vpop.f32.mrf.mxu0
    %v131 = vadd.f32 0.0, %v130
    %v132 = vpop.f32.mrf.mxu0
    %133 = vdwg.mxu0
    %s134 = scalar_lea.vmem %s2, 128
    %v135 = vld [vmem:[%s134] sm:$0xff]
    %v136 = vld [vmem:[%s134 + $0x8] sm:$0xff]
    %v137 = vld [vmem:[%s134 + $0x10] sm:$0xff]
    %v138 = vld [vmem:[%s134 + $0x18] sm:$0xff]
    %v140 = vsel %vm27, %v20, 0
    %v143 = vsel %vm27, %v21, 0
    %145 = vmatprep.subr.mxu0 0.0
    %146 = vmatpush1.msra.mxu0 0.0
    %147 = vmatprep.subr.mxu0 0.0
    %148 = vmatpush1.msra.mxu0 0.0
    %149 = vmatprep.subr.mxu0 0.0
    %150 = vmatpush1.msra.mxu0 0.0
    %151 = vmatprep.subr.mxu0 0.0
    %152 = vmatpush1.msra.mxu0 0.0
    %153 = vmatprep.subr.mxu0 0.0
    %154 = vmatpush1.msra.mxu0 0.0
    %155 = vmatprep.subr.mxu0 0.0
    %156 = vmatpush1.msra.mxu0 0.0
    %157 = vmatprep.subr.mxu0 0.0
    %158 = vmatpush1.msra.mxu0 0.0
    %159 = vmatprep.subr.mxu0 0.0
    %160 = vmatpush1.msra.mxu0 0.0
    %161 = vmatprep.subr.mxu0 0.0
    %162 = vmatpush1.msra.mxu0 0.0
    %163 = vmatprep.subr.mxu0 0.0
    %164 = vmatpush1.msra.mxu0 0.0
    %165 = vmatprep.subr.mxu0 0.0
    %166 = vmatpush1.msra.mxu0 0.0
    %167 = vmatprep.subr.mxu0 0.0
    %168 = vmatpush1.msra.mxu0 0.0
    %169 = vmatprep.subr.mxu0 0.0
    %170 = vmatpush1.msra.mxu0 %v138
    %171 = vmatprep.subr.mxu0 0.0
    %172 = vmatpush1.msra.mxu0 %v137
    %173 = vmatprep.subr.mxu0 0.0
    %174 = vmatpush1.msra.mxu0 %v136
    %175 = vmatprep.subr.mxu0 0.0
    %176 = vmatpush1.msra.mxu0 %v135
    %177 = vmatprep.subr.mxu0 0.0
    %178 = vmatpush2.msra.mxu0 0.0
    %179 = vmatprep.subr.mxu0 0.0
    %180 = vmatpush2.msra.mxu0 0.0
    %181 = vmatprep.subr.mxu0 0.0
    %182 = vmatpush2.msra.mxu0 0.0
    %183 = vmatprep.subr.mxu0 0.0
    %184 = vmatpush2.msra.mxu0 0.0
    %185 = vmatprep.subr.mxu0 0.0
    %186 = vmatpush2.msra.mxu0 0.0
    %187 = vmatprep.subr.mxu0 0.0
    %188 = vmatpush2.msra.mxu0 0.0
    %189 = vmatprep.subr.mxu0 0.0
    %190 = vmatpush2.msra.mxu0 0.0
    %191 = vmatprep.subr.mxu0 0.0
    %192 = vmatpush2.msra.mxu0 0.0
    %193 = vmatprep.subr.mxu0 0.0
    %194 = vmatpush2.msra.mxu0 0.0
    %195 = vmatprep.subr.mxu0 0.0
    %196 = vmatpush2.msra.mxu0 0.0
    %197 = vmatprep.subr.mxu0 0.0
    %198 = vmatpush2.msra.mxu0 0.0
    %199 = vmatprep.subr.mxu0 0.0
    %200 = vmatpush2.msra.mxu0 0.0
    %201 = vmatprep.subr.mxu0 0.0
    %202 = vmatpush2.msra.mxu0 0.0
    %203 = vmatprep.subr.mxu0 0.0
    %204 = vmatpush2.msra.mxu0 0.0
    %205 = vmatprep.subr.mxu0 0.0
    %206 = vmatpush2.msra.mxu0 0.0
    %207 = vmatprep.subr.mxu0 0.0
    %208 = vmatpush2.msra.mxu0 0.0
    %209 = vmatprep.mubr.f32.mxu0 0.0
    %210 = vmatmul.mubr.f32.gmra.mxu0 %v140
    %v211 = vpop.f32.mrf.mxu0
    %v212 = vadd.f32 0.0, %v211
    %v213 = vpop.f32.mrf.mxu0
    %214 = vmatprep.mubr.f32.mxu0 0.0
    %215 = vmatmul.mubr.f32.gmra.mxu0 %v143
    %v216 = vpop.f32.mrf.mxu0
    %v217 = vadd.f32 0.0, %v216
    %v218 = vpop.f32.mrf.mxu0
    %219 = vdwg.mxu0
    %s220 = scalar_lea.vmem %s2, 256
    %v221 = vld [vmem:[%s220] sm:$0xff]
    %v222 = vld [vmem:[%s220 + $0x8] sm:$0xff]
    %v223 = vld [vmem:[%s220 + $0x10] sm:$0xff]
    %v224 = vld [vmem:[%s220 + $0x18] sm:$0xff]
    %225 = vmatprep.subr.mxu0 0.0
    %226 = vmatpush1.msra.mxu0 0.0
    %227 = vmatprep.subr.mxu0 0.0
    %228 = vmatpush1.msra.mxu0 0.0
    %229 = vmatprep.subr.mxu0 0.0
    %230 = vmatpush1.msra.mxu0 0.0
    %231 = vmatprep.subr.mxu0 0.0
    %232 = vmatpush1.msra.mxu0 0.0
    %233 = vmatprep.subr.mxu0 0.0
    %234 = vmatpush1.msra.mxu0 0.0
    %235 = vmatprep.subr.mxu0 0.0
    %236 = vmatpush1.msra.mxu0 0.0
    %237 = vmatprep.subr.mxu0 0.0
    %238 = vmatpush1.msra.mxu0 0.0
    %239 = vmatprep.subr.mxu0 0.0
    %240 = vmatpush1.msra.mxu0 0.0
    %241 = vmatprep.subr.mxu0 0.0
    %242 = vmatpush1.msra.mxu0 0.0
    %243 = vmatprep.subr.mxu0 0.0
    %244 = vmatpush1.msra.mxu0 0.0
    %245 = vmatprep.subr.mxu0 0.0
    %246 = vmatpush1.msra.mxu0 0.0
    %247 = vmatprep.subr.mxu0 0.0
    %248 = vmatpush1.msra.mxu0 0.0
    %249 = vmatprep.subr.mxu0 0.0
    %250 = vmatpush1.msra.mxu0 %v224
    %251 = vmatprep.subr.mxu0 0.0
    %252 = vmatpush1.msra.mxu0 %v223
    %253 = vmatprep.subr.mxu0 0.0
    %254 = vmatpush1.msra.mxu0 %v222
    %255 = vmatprep.subr.mxu0 0.0
    %256 = vmatpush1.msra.mxu0 %v221
    %257 = vmatprep.subr.mxu0 0.0
    %258 = vmatpush2.msra.mxu0 0.0
    %259 = vmatprep.subr.mxu0 0.0
    %260 = vmatpush2.msra.mxu0 0.0
    %261 = vmatprep.subr.mxu0 0.0
    %262 = vmatpush2.msra.mxu0 0.0
    %263 = vmatprep.subr.mxu0 0.0
    %264 = vmatpush2.msra.mxu0 0.0
    %265 = vmatprep.subr.mxu0 0.0
    %266 = vmatpush2.msra.mxu0 0.0
    %267 = vmatprep.subr.mxu0 0.0
    %268 = vmatpush2.msra.mxu0 0.0
    %269 = vmatprep.subr.mxu0 0.0
    %270 = vmatpush2.msra.mxu0 0.0
    %271 = vmatprep.subr.mxu0 0.0
    %272 = vmatpush2.msra.mxu0 0.0
    %273 = vmatprep.subr.mxu0 0.0
    %274 = vmatpush2.msra.mxu0 0.0
    %275 = vmatprep.subr.mxu0 0.0
    %276 = vmatpush2.msra.mxu0 0.0
    %277 = vmatprep.subr.mxu0 0.0
    %278 = vmatpush2.msra.mxu0 0.0
    %279 = vmatprep.subr.mxu0 0.0
    %280 = vmatpush2.msra.mxu0 0.0
    %281 = vmatprep.subr.mxu0 0.0
    %282 = vmatpush2.msra.mxu0 0.0
    %283 = vmatprep.subr.mxu0 0.0
    %284 = vmatpush2.msra.mxu0 0.0
    %285 = vmatprep.subr.mxu0 0.0
    %286 = vmatpush2.msra.mxu0 0.0
    %287 = vmatprep.subr.mxu0 0.0
    %288 = vmatpush2.msra.mxu0 0.0
    %289 = vmatprep.mubr.f32.mxu0 0.0
    %290 = vmatmul.mubr.f32.gmra.mxu0 %v140
    %v291 = vpop.f32.mrf.mxu0
    %v292 = vadd.f32 0.0, %v291
    %v293 = vpop.f32.mrf.mxu0
    %294 = vmatprep.mubr.f32.mxu0 0.0
    %295 = vmatmul.mubr.f32.gmra.mxu0 %v143
    %v296 = vpop.f32.mrf.mxu0
    %v297 = vadd.f32 0.0, %v296
    %v298 = vpop.f32.mrf.mxu0
    %299 = vdwg.mxu0
    %vm300 = vcmask 64512
    %v302 = vsel %vm300, %v126, 0
    %v305 = vsel %vm300, %v131, 0
    %v308 = vsel %vm300, %v212, 0
    %v311 = vsel %vm300, %v217, 0
    %313 = vmatprep.subr.mxu0 0.0
    %314 = vmatpush1.xpose.msra.mxu0 0.0
    %315 = vmatprep.subr.mxu0 0.0
    %316 = vmatpush1.xpose.msra.mxu0 0.0
    %317 = vmatprep.subr.mxu0 0.0
    %318 = vmatpush1.xpose.msra.mxu0 0.0
    %319 = vmatprep.subr.mxu0 0.0
    %320 = vmatpush1.xpose.msra.mxu0 0.0
    %321 = vmatprep.subr.mxu0 0.0
    %322 = vmatpush1.xpose.msra.mxu0 0.0
    %323 = vmatprep.subr.mxu0 0.0
    %324 = vmatpush1.xpose.msra.mxu0 0.0
    %325 = vmatprep.subr.mxu0 0.0
    %326 = vmatpush1.xpose.msra.mxu0 0.0
    %327 = vmatprep.subr.mxu0 0.0
    %328 = vmatpush1.xpose.msra.mxu0 0.0
    %329 = vmatprep.subr.mxu0 0.0
    %330 = vmatpush1.xpose.msra.mxu0 0.0
    %331 = vmatprep.subr.mxu0 0.0
    %332 = vmatpush1.xpose.msra.mxu0 0.0
    %333 = vmatprep.subr.mxu0 0.0
    %334 = vmatpush1.xpose.msra.mxu0 0.0
    %335 = vmatprep.subr.mxu0 0.0
    %336 = vmatpush1.xpose.msra.mxu0 0.0
    %337 = vmatprep.subr.mxu0 0.0
    %338 = vmatpush1.xpose.msra.mxu0 0.0
    %339 = vmatprep.subr.mxu0 0.0
    %340 = vmatpush1.xpose.msra.mxu0 0.0
    %341 = vmatprep.subr.mxu0 0.0
    %342 = vmatpush1.xpose.msra.mxu0 %v311
    %343 = vmatprep.subr.mxu0 0.0
    %344 = vmatpush1.xpose.msra.mxu0 %v308
    %345 = vmatprep.subr.mxu0 0.0
    %346 = vmatpush2.xpose.msra.mxu0 0.0
    %347 = vmatprep.subr.mxu0 0.0
    %348 = vmatpush2.xpose.msra.mxu0 0.0
    %349 = vmatprep.subr.mxu0 0.0
    %350 = vmatpush2.xpose.msra.mxu0 0.0
    %351 = vmatprep.subr.mxu0 0.0
    %352 = vmatpush2.xpose.msra.mxu0 0.0
    %353 = vmatprep.subr.mxu0 0.0
    %354 = vmatpush2.xpose.msra.mxu0 0.0
    %355 = vmatprep.subr.mxu0 0.0
    %356 = vmatpush2.xpose.msra.mxu0 0.0
    %357 = vmatprep.subr.mxu0 0.0
    %358 = vmatpush2.xpose.msra.mxu0 0.0
    %359 = vmatprep.subr.mxu0 0.0
    %360 = vmatpush2.xpose.msra.mxu0 0.0
    %361 = vmatprep.subr.mxu0 0.0
    %362 = vmatpush2.xpose.msra.mxu0 0.0
    %363 = vmatprep.subr.mxu0 0.0
    %364 = vmatpush2.xpose.msra.mxu0 0.0
    %365 = vmatprep.subr.mxu0 0.0
    %366 = vmatpush2.xpose.msra.mxu0 0.0
    %367 = vmatprep.subr.mxu0 0.0
    %368 = vmatpush2.xpose.msra.mxu0 0.0
    %369 = vmatprep.subr.mxu0 0.0
    %370 = vmatpush2.xpose.msra.mxu0 0.0
    %371 = vmatprep.subr.mxu0 0.0
    %372 = vmatpush2.xpose.msra.mxu0 0.0
    %373 = vmatprep.subr.mxu0 0.0
    %374 = vmatpush2.xpose.msra.mxu0 0.0
    %375 = vmatprep.subr.mxu0 0.0
    %376 = vmatpush2.xpose.msra.mxu0 0.0
    %377 = vmatprep.mubr.f32.mxu0 0.0
    %378 = vmatmul.mubr.f32.gmra.mxu0 %v302
    %v379 = vpop.f32.mrf.mxu0
    %v380 = vadd.f32 %v22, %v379
    %v381 = vpop.f32.mrf.mxu0
    %382 = vmatprep.mubr.f32.mxu0 0.0
    %383 = vmatmul.mubr.f32.gmra.mxu0 %v305
    %v384 = vpop.f32.mrf.mxu0
    %v385 = vadd.f32 %v23, %v384
    %v386 = vpop.f32.mrf.mxu0
    %387 = vdwg.mxu0
    %vm388 = vcmask 130048
    %v389 = vsel %vm388, %v380, -inf
    %390 = vmax.xlane.f32.xlu0 %v389
    %v391 = vpop.xlane.xlu0 %390
    %v392 = vsel %vm388, %v385, -inf
    %393 = vmax.xlane.f32.xlu0 %v392
    %v394 = vpop.xlane.xlu0 %393
    %v395 = vsub.f32 %v380, %v391
    %v396 = vsub.f32 %v385, %v394
    %v397 = vmul.f32 %v395, 1.442695
    %v398 = vpow.pop %v397
    %v399 = vmul.f32 %v396, 1.442695
    %v400 = vpow.pop %v399
    %v401 = vsel %vm388, %v398, 0.0
    %402 = vadd.xlane.f32.xlu0 %v401
    %v403 = vpop.xlane.xlu0 %402
    %v404 = vsel %vm388, %v400, 0.0
    %405 = vadd.xlane.f32.xlu0 %v404
    %v406 = vpop.xlane.xlu0 %405
    %v407 = vrcp.pop %v403
    %v408 = vmul.f32 %v398, %v407
    %v409 = vrcp.pop %v406
    %v410 = vmul.f32 %v400, %v409
    %v412 = vsel %vm388, %v408, 0
    %v415 = vsel %vm388, %v410, 0
    %417 = vmatprep.subr.mxu0 0.0
    %418 = vmatpush1.msra.mxu0 0.0
    %419 = vmatprep.subr.mxu0 0.0
    %420 = vmatpush1.msra.mxu0 0.0
    %421 = vmatprep.subr.mxu0 0.0
    %422 = vmatpush1.msra.mxu0 0.0
    %423 = vmatprep.subr.mxu0 0.0
    %424 = vmatpush1.msra.mxu0 0.0
    %425 = vmatprep.subr.mxu0 0.0
    %426 = vmatpush1.msra.mxu0 0.0
    %427 = vmatprep.subr.mxu0 0.0
    %428 = vmatpush1.msra.mxu0 0.0
    %429 = vmatprep.subr.mxu0 0.0
    %430 = vmatpush1.msra.mxu0 0.0
    %431 = vmatprep.subr.mxu0 0.0
    %432 = vmatpush1.msra.mxu0 0.0
    %433 = vmatprep.subr.mxu0 0.0
    %434 = vmatpush1.msra.mxu0 0.0
    %435 = vmatprep.subr.mxu0 0.0
    %436 = vmatpush1.msra.mxu0 0.0
    %437 = vmatprep.subr.mxu0 0.0
    %438 = vmatpush1.msra.mxu0 0.0
    %439 = vmatprep.subr.mxu0 0.0
    %440 = vmatpush1.msra.mxu0 0.0
    %441 = vmatprep.subr.mxu0 0.0
    %442 = vmatpush1.msra.mxu0 0.0
    %443 = vmatprep.subr.mxu0 0.0
    %444 = vmatpush1.msra.mxu0 0.0
    %445 = vmatprep.subr.mxu0 0.0
    %446 = vmatpush1.msra.mxu0 %v297
    %447 = vmatprep.subr.mxu0 0.0
    %448 = vmatpush1.msra.mxu0 %v292
    %449 = vmatprep.subr.mxu0 0.0
    %450 = vmatpush2.msra.mxu0 0.0
    %451 = vmatprep.subr.mxu0 0.0
    %452 = vmatpush2.msra.mxu0 0.0
    %453 = vmatprep.subr.mxu0 0.0
    %454 = vmatpush2.msra.mxu0 0.0
    %455 = vmatprep.subr.mxu0 0.0
    %456 = vmatpush2.msra.mxu0 0.0
    %457 = vmatprep.subr.mxu0 0.0
    %458 = vmatpush2.msra.mxu0 0.0
    %459 = vmatprep.subr.mxu0 0.0
    %460 = vmatpush2.msra.mxu0 0.0
    %461 = vmatprep.subr.mxu0 0.0
    %462 = vmatpush2.msra.mxu0 0.0
    %463 = vmatprep.subr.mxu0 0.0
    %464 = vmatpush2.msra.mxu0 0.0
    %465 = vmatprep.subr.mxu0 0.0
    %466 = vmatpush2.msra.mxu0 0.0
    %467 = vmatprep.subr.mxu0 0.0
    %468 = vmatpush2.msra.mxu0 0.0
    %469 = vmatprep.subr.mxu0 0.0
    %470 = vmatpush2.msra.mxu0 0.0
    %471 = vmatprep.subr.mxu0 0.0
    %472 = vmatpush2.msra.mxu0 0.0
    %473 = vmatprep.subr.mxu0 0.0
    %474 = vmatpush2.msra.mxu0 0.0
    %475 = vmatprep.subr.mxu0 0.0
    %476 = vmatpush2.msra.mxu0 0.0
    %477 = vmatprep.subr.mxu0 0.0
    %478 = vmatpush2.msra.mxu0 0.0
    %479 = vmatprep.subr.mxu0 0.0
    %480 = vmatpush2.msra.mxu0 0.0
    %481 = vmatprep.mubr.f32.mxu0 0.0
    %482 = vmatmul.mubr.f32.gmra.mxu0 %v412
    %v483 = vpop.f32.mrf.mxu0
    %v484 = vadd.f32 0.0, %v483
    %v485 = vpop.f32.mrf.mxu0
    %486 = vmatprep.mubr.f32.mxu0 0.0
    %487 = vmatmul.mubr.f32.gmra.mxu0 %v415
    %v488 = vpop.f32.mrf.mxu0
    %v489 = vadd.f32 0.0, %v488
    %v490 = vpop.f32.mrf.mxu0
    %491 = vdwg.mxu0
    %v492 = vld [vmem:[%s3] sm:$0xff]
    %s493 = scalar_lea.vmem %s2, 32
    %v494 = vld [vmem:[%s493] sm:$0xff]
    %v495 = vld [vmem:[%s493 + $0x8] sm:$0xff]
    %v496 = vld [vmem:[%s493 + $0x10] sm:$0xff]
    %v497 = vld [vmem:[%s493 + $0x18] sm:$0xff]
    %498 = vmatprep.subr.mxu0 0.0
    %499 = vmatpush1.msra.mxu0 0.0
    %500 = vmatprep.subr.mxu0 0.0
    %501 = vmatpush1.msra.mxu0 0.0
    %502 = vmatprep.subr.mxu0 0.0
    %503 = vmatpush1.msra.mxu0 0.0
    %504 = vmatprep.subr.mxu0 0.0
    %505 = vmatpush1.msra.mxu0 0.0
    %506 = vmatprep.subr.mxu0 0.0
    %507 = vmatpush1.msra.mxu0 0.0
    %508 = vmatprep.subr.mxu0 0.0
    %509 = vmatpush1.msra.mxu0 0.0
    %510 = vmatprep.subr.mxu0 0.0
    %511 = vmatpush1.msra.mxu0 0.0
    %512 = vmatprep.subr.mxu0 0.0
    %513 = vmatpush1.msra.mxu0 0.0
    %514 = vmatprep.subr.mxu0 0.0
    %515 = vmatpush1.msra.mxu0 0.0
    %516 = vmatprep.subr.mxu0 0.0
    %517 = vmatpush1.msra.mxu0 0.0
    %518 = vmatprep.subr.mxu0 0.0
    %519 = vmatpush1.msra.mxu0 0.0
    %520 = vmatprep.subr.mxu0 0.0
    %521 = vmatpush1.msra.mxu0 0.0
    %522 = vmatprep.subr.mxu0 0.0
    %523 = vmatpush1.msra.mxu0 %v497
    %524 = vmatprep.subr.mxu0 0.0
    %525 = vmatpush1.msra.mxu0 %v496
    %526 = vmatprep.subr.mxu0 0.0
    %527 = vmatpush1.msra.mxu0 %v495
    %528 = vmatprep.subr.mxu0 0.0
    %529 = vmatpush1.msra.mxu0 %v494
    %530 = vmatprep.subr.mxu0 0.0
    %531 = vmatpush2.msra.mxu0 0.0
    %532 = vmatprep.subr.mxu0 0.0
    %533 = vmatpush2.msra.mxu0 0.0
    %534 = vmatprep.subr.mxu0 0.0
    %535 = vmatpush2.msra.mxu0 0.0
    %536 = vmatprep.subr.mxu0 0.0
    %537 = vmatpush2.msra.mxu0 0.0
    %538 = vmatprep.subr.mxu0 0.0
    %539 = vmatpush2.msra.mxu0 0.0
    %540 = vmatprep.subr.mxu0 0.0
    %541 = vmatpush2.msra.mxu0 0.0
    %542 = vmatprep.subr.mxu0 0.0
    %543 = vmatpush2.msra.mxu0 0.0
    %544 = vmatprep.subr.mxu0 0.0
    %545 = vmatpush2.msra.mxu0 0.0
    %546 = vmatprep.subr.mxu0 0.0
    %547 = vmatpush2.msra.mxu0 0.0
    %548 = vmatprep.subr.mxu0 0.0
    %549 = vmatpush2.msra.mxu0 0.0
    %550 = vmatprep.subr.mxu0 0.0
    %551 = vmatpush2.msra.mxu0 0.0
    %552 = vmatprep.subr.mxu0 0.0
    %553 = vmatpush2.msra.mxu0 0.0
    %554 = vmatprep.subr.mxu0 0.0
    %555 = vmatpush2.msra.mxu0 0.0
    %556 = vmatprep.subr.mxu0 0.0
    %557 = vmatpush2.msra.mxu0 0.0
    %558 = vmatprep.subr.mxu0 0.0
    %559 = vmatpush2.msra.mxu0 0.0
    %560 = vmatprep.subr.mxu0 0.0
    %561 = vmatpush2.msra.mxu0 0.0
    %562 = vmatprep.mubr.f32.mxu0 0.0
    %563 = vmatmul.mubr.f32.gmra.mxu0 %v54
    %v564 = vpop.f32.mrf.mxu0
    %v565 = vadd.f32 0.0, %v564
    %v566 = vpop.f32.mrf.mxu0
    %567 = vmatprep.mubr.f32.mxu0 0.0
    %568 = vmatmul.mubr.f32.gmra.mxu0 %v57
    %v569 = vpop.f32.mrf.mxu0
    %v570 = vadd.f32 0.0, %v569
    %v571 = vpop.f32.mrf.mxu0
    %572 = vdwg.mxu0
    %s573 = scalar_lea.vmem %s2, 160
    %v574 = vld [vmem:[%s573] sm:$0xff]
    %v575 = vld [vmem:[%s573 + $0x8] sm:$0xff]
    %v576 = vld [vmem:[%s573 + $0x10] sm:$0xff]
    %v577 = vld [vmem:[%s573 + $0x18] sm:$0xff]
    %578 = vmatprep.subr.mxu0 0.0
    %579 = vmatpush1.msra.mxu0 0.0
    %580 = vmatprep.subr.mxu0 0.0
    %581 = vmatpush1.msra.mxu0 0.0
    %582 = vmatprep.subr.mxu0 0.0
    %583 = vmatpush1.msra.mxu0 0.0
    %584 = vmatprep.subr.mxu0 0.0
    %585 = vmatpush1.msra.mxu0 0.0
    %586 = vmatprep.subr.mxu0 0.0
    %587 = vmatpush1.msra.mxu0 0.0
    %588 = vmatprep.subr.mxu0 0.0
    %589 = vmatpush1.msra.mxu0 0.0
    %590 = vmatprep.subr.mxu0 0.0
    %591 = vmatpush1.msra.mxu0 0.0
    %592 = vmatprep.subr.mxu0 0.0
    %593 = vmatpush1.msra.mxu0 0.0
    %594 = vmatprep.subr.mxu0 0.0
    %595 = vmatpush1.msra.mxu0 0.0
    %596 = vmatprep.subr.mxu0 0.0
    %597 = vmatpush1.msra.mxu0 0.0
    %598 = vmatprep.subr.mxu0 0.0
    %599 = vmatpush1.msra.mxu0 0.0
    %600 = vmatprep.subr.mxu0 0.0
    %601 = vmatpush1.msra.mxu0 0.0
    %602 = vmatprep.subr.mxu0 0.0
    %603 = vmatpush1.msra.mxu0 %v577
    %604 = vmatprep.subr.mxu0 0.0
    %605 = vmatpush1.msra.mxu0 %v576
    %606 = vmatprep.subr.mxu0 0.0
    %607 = vmatpush1.msra.mxu0 %v575
    %608 = vmatprep.subr.mxu0 0.0
    %609 = vmatpush1.msra.mxu0 %v574
    %610 = vmatprep.subr.mxu0 0.0
    %611 = vmatpush2.msra.mxu0 0.0
    %612 = vmatprep.subr.mxu0 0.0
    %613 = vmatpush2.msra.mxu0 0.0
    %614 = vmatprep.subr.mxu0 0.0
    %615 = vmatpush2.msra.mxu0 0.0
    %616 = vmatprep.subr.mxu0 0.0
    %617 = vmatpush2.msra.mxu0 0.0
    %618 = vmatprep.subr.mxu0 0.0
    %619 = vmatpush2.msra.mxu0 0.0
    %620 = vmatprep.subr.mxu0 0.0
    %621 = vmatpush2.msra.mxu0 0.0
    %622 = vmatprep.subr.mxu0 0.0
    %623 = vmatpush2.msra.mxu0 0.0
    %624 = vmatprep.subr.mxu0 0.0
    %625 = vmatpush2.msra.mxu0 0.0
    %626 = vmatprep.subr.mxu0 0.0
    %627 = vmatpush2.msra.mxu0 0.0
    %628 = vmatprep.subr.mxu0 0.0
    %629 = vmatpush2.msra.mxu0 0.0
    %630 = vmatprep.subr.mxu0 0.0
    %631 = vmatpush2.msra.mxu0 0.0
    %632 = vmatprep.subr.mxu0 0.0
    %633 = vmatpush2.msra.mxu0 0.0
    %634 = vmatprep.subr.mxu0 0.0
    %635 = vmatpush2.msra.mxu0 0.0
    %636 = vmatprep.subr.mxu0 0.0
    %637 = vmatpush2.msra.mxu0 0.0
    %638 = vmatprep.subr.mxu0 0.0
    %639 = vmatpush2.msra.mxu0 0.0
    %640 = vmatprep.subr.mxu0 0.0
    %641 = vmatpush2.msra.mxu0 0.0
    %642 = vmatprep.mubr.f32.mxu0 0.0
    %643 = vmatmul.mubr.f32.gmra.mxu0 %v140
    %v644 = vpop.f32.mrf.mxu0
    %v645 = vadd.f32 0.0, %v644
    %v646 = vpop.f32.mrf.mxu0
    %647 = vmatprep.mubr.f32.mxu0 0.0
    %648 = vmatmul.mubr.f32.gmra.mxu0 %v143
    %v649 = vpop.f32.mrf.mxu0
    %v650 = vadd.f32 0.0, %v649
    %v651 = vpop.f32.mrf.mxu0
    %652 = vdwg.mxu0
    %s653 = scalar_lea.vmem %s2, 288
    %v654 = vld [vmem:[%s653] sm:$0xff]
    %v655 = vld [vmem:[%s653 + $0x8] sm:$0xff]
    %v656 = vld [vmem:[%s653 + $0x10] sm:$0xff]
    %v657 = vld [vmem:[%s653 + $0x18] sm:$0xff]
    %658 = vmatprep.subr.mxu0 0.0
    %659 = vmatpush1.msra.mxu0 0.0
    %660 = vmatprep.subr.mxu0 0.0
    %661 = vmatpush1.msra.mxu0 0.0
    %662 = vmatprep.subr.mxu0 0.0
    %663 = vmatpush1.msra.mxu0 0.0
    %664 = vmatprep.subr.mxu0 0.0
    %665 = vmatpush1.msra.mxu0 0.0
    %666 = vmatprep.subr.mxu0 0.0
    %667 = vmatpush1.msra.mxu0 0.0
    %668 = vmatprep.subr.mxu0 0.0
    %669 = vmatpush1.msra.mxu0 0.0
    %670 = vmatprep.subr.mxu0 0.0
    %671 = vmatpush1.msra.mxu0 0.0
    %672 = vmatprep.subr.mxu0 0.0
    %673 = vmatpush1.msra.mxu0 0.0
    %674 = vmatprep.subr.mxu0 0.0
    %675 = vmatpush1.msra.mxu0 0.0
    %676 = vmatprep.subr.mxu0 0.0
    %677 = vmatpush1.msra.mxu0 0.0
    %678 = vmatprep.subr.mxu0 0.0
    %679 = vmatpush1.msra.mxu0 0.0
    %680 = vmatprep.subr.mxu0 0.0
    %681 = vmatpush1.msra.mxu0 0.0
    %682 = vmatprep.subr.mxu0 0.0
    %683 = vmatpush1.msra.mxu0 %v657
    %684 = vmatprep.subr.mxu0 0.0
    %685 = vmatpush1.msra.mxu0 %v656
    %686 = vmatprep.subr.mxu0 0.0
    %687 = vmatpush1.msra.mxu0 %v655
    %688 = vmatprep.subr.mxu0 0.0
    %689 = vmatpush1.msra.mxu0 %v654
    %690 = vmatprep.subr.mxu0 0.0
    %691 = vmatpush2.msra.mxu0 0.0
    %692 = vmatprep.subr.mxu0 0.0
    %693 = vmatpush2.msra.mxu0 0.0
    %694 = vmatprep.subr.mxu0 0.0
    %695 = vmatpush2.msra.mxu0 0.0
    %696 = vmatprep.subr.mxu0 0.0
    %697 = vmatpush2.msra.mxu0 0.0
    %698 = vmatprep.subr.mxu0 0.0
    %699 = vmatpush2.msra.mxu0 0.0
    %700 = vmatprep.subr.mxu0 0.0
    %701 = vmatpush2.msra.mxu0 0.0
    %702 = vmatprep.subr.mxu0 0.0
    %703 = vmatpush2.msra.mxu0 0.0
    %704 = vmatprep.subr.mxu0 0.0
    %705 = vmatpush2.msra.mxu0 0.0
    %706 = vmatprep.subr.mxu0 0.0
    %707 = vmatpush2.msra.mxu0 0.0
    %708 = vmatprep.subr.mxu0 0.0
    %709 = vmatpush2.msra.mxu0 0.0
    %710 = vmatprep.subr.mxu0 0.0
    %711 = vmatpush2.msra.mxu0 0.0
    %712 = vmatprep.subr.mxu0 0.0
    %713 = vmatpush2.msra.mxu0 0.0
    %714 = vmatprep.subr.mxu0 0.0
    %715 = vmatpush2.msra.mxu0 0.0
    %716 = vmatprep.subr.mxu0 0.0
    %717 = vmatpush2.msra.mxu0 0.0
    %718 = vmatprep.subr.mxu0 0.0
    %719 = vmatpush2.msra.mxu0 0.0
    %720 = vmatprep.subr.mxu0 0.0
    %721 = vmatpush2.msra.mxu0 0.0
    %722 = vmatprep.mubr.f32.mxu0 0.0
    %723 = vmatmul.mubr.f32.gmra.mxu0 %v140
    %v724 = vpop.f32.mrf.mxu0
    %v725 = vadd.f32 0.0, %v724
    %v726 = vpop.f32.mrf.mxu0
    %727 = vmatprep.mubr.f32.mxu0 0.0
    %728 = vmatmul.mubr.f32.gmra.mxu0 %v143
    %v729 = vpop.f32.mrf.mxu0
    %v730 = vadd.f32 0.0, %v729
    %v731 = vpop.f32.mrf.mxu0
    %732 = vdwg.mxu0
    %v734 = vsel %vm300, %v565, 0
    %v737 = vsel %vm300, %v570, 0
    %v740 = vsel %vm300, %v645, 0
    %v743 = vsel %vm300, %v650, 0
    %745 = vmatprep.subr.mxu0 0.0
    %746 = vmatpush1.xpose.msra.mxu0 0.0
    %747 = vmatprep.subr.mxu0 0.0
    %748 = vmatpush1.xpose.msra.mxu0 0.0
    %749 = vmatprep.subr.mxu0 0.0
    %750 = vmatpush1.xpose.msra.mxu0 0.0
    %751 = vmatprep.subr.mxu0 0.0
    %752 = vmatpush1.xpose.msra.mxu0 0.0
    %753 = vmatprep.subr.mxu0 0.0
    %754 = vmatpush1.xpose.msra.mxu0 0.0
    %755 = vmatprep.subr.mxu0 0.0
    %756 = vmatpush1.xpose.msra.mxu0 0.0
    %757 = vmatprep.subr.mxu0 0.0
    %758 = vmatpush1.xpose.msra.mxu0 0.0
    %759 = vmatprep.subr.mxu0 0.0
    %760 = vmatpush1.xpose.msra.mxu0 0.0
    %761 = vmatprep.subr.mxu0 0.0
    %762 = vmatpush1.xpose.msra.mxu0 0.0
    %763 = vmatprep.subr.mxu0 0.0
    %764 = vmatpush1.xpose.msra.mxu0 0.0
    %765 = vmatprep.subr.mxu0 0.0
    %766 = vmatpush1.xpose.msra.mxu0 0.0
    %767 = vmatprep.subr.mxu0 0.0
    %768 = vmatpush1.xpose.msra.mxu0 0.0
    %769 = vmatprep.subr.mxu0 0.0
    %770 = vmatpush1.xpose.msra.mxu0 0.0
    %771 = vmatprep.subr.mxu0 0.0
    %772 = vmatpush1.xpose.msra.mxu0 0.0
    %773 = vmatprep.subr.mxu0 0.0
    %774 = vmatpush1.xpose.msra.mxu0 %v743
    %775 = vmatprep.subr.mxu0 0.0
    %776 = vmatpush1.xpose.msra.mxu0 %v740
    %777 = vmatprep.subr.mxu0 0.0
    %778 = vmatpush2.xpose.msra.mxu0 0.0
    %779 = vmatprep.subr.mxu0 0.0
    %780 = vmatpush2.xpose.msra.mxu0 0.0
    %781 = vmatprep.subr.mxu0 0.0
    %782 = vmatpush2.xpose.msra.mxu0 0.0
    %783 = vmatprep.subr.mxu0 0.0
    %784 = vmatpush2.xpose.msra.mxu0 0.0
    %785 = vmatprep.subr.mxu0 0.0
    %786 = vmatpush2.xpose.msra.mxu0 0.0
    %787 = vmatprep.subr.mxu0 0.0
    %788 = vmatpush2.xpose.msra.mxu0 0.0
    %789 = vmatprep.subr.mxu0 0.0
    %790 = vmatpush2.xpose.msra.mxu0 0.0
    %791 = vmatprep.subr.mxu0 0.0
    %792 = vmatpush2.xpose.msra.mxu0 0.0
    %793 = vmatprep.subr.mxu0 0.0
    %794 = vmatpush2.xpose.msra.mxu0 0.0
    %795 = vmatprep.subr.mxu0 0.0
    %796 = vmatpush2.xpose.msra.mxu0 0.0
    %797 = vmatprep.subr.mxu0 0.0
    %798 = vmatpush2.xpose.msra.mxu0 0.0
    %799 = vmatprep.subr.mxu0 0.0
    %800 = vmatpush2.xpose.msra.mxu0 0.0
    %801 = vmatprep.subr.mxu0 0.0
    %802 = vmatpush2.xpose.msra.mxu0 0.0
    %803 = vmatprep.subr.mxu0 0.0
    %804 = vmatpush2.xpose.msra.mxu0 0.0
    %805 = vmatprep.subr.mxu0 0.0
    %806 = vmatpush2.xpose.msra.mxu0 0.0
    %807 = vmatprep.subr.mxu0 0.0
    %808 = vmatpush2.xpose.msra.mxu0 0.0
    %809 = vmatprep.mubr.f32.mxu0 0.0
    %810 = vmatmul.mubr.f32.gmra.mxu0 %v734
    %v811 = vpop.f32.mrf.mxu0
    %v812 = vadd.f32 %v22, %v811
    %v813 = vpop.f32.mrf.mxu0
    %814 = vmatprep.mubr.f32.mxu0 0.0
    %815 = vmatmul.mubr.f32.gmra.mxu0 %v737
    %v816 = vpop.f32.mrf.mxu0
    %v817 = vadd.f32 %v23, %v816
    %v818 = vpop.f32.mrf.mxu0
    %819 = vdwg.mxu0
    %v820 = vsel %vm388, %v812, -inf
    %821 = vmax.xlane.f32.xlu0 %v820
    %v822 = vpop.xlane.xlu0 %821
    %v823 = vsel %vm388, %v817, -inf
    %824 = vmax.xlane.f32.xlu0 %v823
    %v825 = vpop.xlane.xlu0 %824
    %v826 = vsub.f32 %v812, %v822
    %v827 = vsub.f32 %v817, %v825
    %v828 = vmul.f32 %v826, 1.442695
    %v829 = vpow.pop %v828
    %v830 = vmul.f32 %v827, 1.442695
    %v831 = vpow.pop %v830
    %v832 = vsel %vm388, %v829, 0.0
    %833 = vadd.xlane.f32.xlu0 %v832
    %v834 = vpop.xlane.xlu0 %833
    %v835 = vsel %vm388, %v831, 0.0
    %836 = vadd.xlane.f32.xlu0 %v835
    %v837 = vpop.xlane.xlu0 %836
    %v838 = vrcp.pop %v834
    %v839 = vmul.f32 %v829, %v838
    %v840 = vrcp.pop %v837
    %v841 = vmul.f32 %v831, %v840
    %v843 = vsel %vm388, %v839, 0
    %v846 = vsel %vm388, %v841, 0
    %848 = vmatprep.subr.mxu0 0.0
    %849 = vmatpush1.msra.mxu0 0.0
    %850 = vmatprep.subr.mxu0 0.0
    %851 = vmatpush1.msra.mxu0 0.0
    %852 = vmatprep.subr.mxu0 0.0
    %853 = vmatpush1.msra.mxu0 0.0
    %854 = vmatprep.subr.mxu0 0.0
    %855 = vmatpush1.msra.mxu0 0.0
    %856 = vmatprep.subr.mxu0 0.0
    %857 = vmatpush1.msra.mxu0 0.0
    %858 = vmatprep.subr.mxu0 0.0
    %859 = vmatpush1.msra.mxu0 0.0
    %860 = vmatprep.subr.mxu0 0.0
    %861 = vmatpush1.msra.mxu0 0.0
    %862 = vmatprep.subr.mxu0 0.0
    %863 = vmatpush1.msra.mxu0 0.0
    %864 = vmatprep.subr.mxu0 0.0
    %865 = vmatpush1.msra.mxu0 0.0
    %866 = vmatprep.subr.mxu0 0.0
    %867 = vmatpush1.msra.mxu0 0.0
    %868 = vmatprep.subr.mxu0 0.0
    %869 = vmatpush1.msra.mxu0 0.0
    %870 = vmatprep.subr.mxu0 0.0
    %871 = vmatpush1.msra.mxu0 0.0
    %872 = vmatprep.subr.mxu0 0.0
    %873 = vmatpush1.msra.mxu0 0.0
    %874 = vmatprep.subr.mxu0 0.0
    %875 = vmatpush1.msra.mxu0 0.0
    %876 = vmatprep.subr.mxu0 0.0
    %877 = vmatpush1.msra.mxu0 %v730
    %878 = vmatprep.subr.mxu0 0.0
    %879 = vmatpush1.msra.mxu0 %v725
    %880 = vmatprep.subr.mxu0 0.0
    %881 = vmatpush2.msra.mxu0 0.0
    %882 = vmatprep.subr.mxu0 0.0
    %883 = vmatpush2.msra.mxu0 0.0
    %884 = vmatprep.subr.mxu0 0.0
    %885 = vmatpush2.msra.mxu0 0.0
    %886 = vmatprep.subr.mxu0 0.0
    %887 = vmatpush2.msra.mxu0 0.0
    %888 = vmatprep.subr.mxu0 0.0
    %889 = vmatpush2.msra.mxu0 0.0
    %890 = vmatprep.subr.mxu0 0.0
    %891 = vmatpush2.msra.mxu0 0.0
    %892 = vmatprep.subr.mxu0 0.0
    %893 = vmatpush2.msra.mxu0 0.0
    %894 = vmatprep.subr.mxu0 0.0
    %895 = vmatpush2.msra.mxu0 0.0
    %896 = vmatprep.subr.mxu0 0.0
    %897 = vmatpush2.msra.mxu0 0.0
    %898 = vmatprep.subr.mxu0 0.0
    %899 = vmatpush2.msra.mxu0 0.0
    %900 = vmatprep.subr.mxu0 0.0
    %901 = vmatpush2.msra.mxu0 0.0
    %902 = vmatprep.subr.mxu0 0.0
    %903 = vmatpush2.msra.mxu0 0.0
    %904 = vmatprep.subr.mxu0 0.0
    %905 = vmatpush2.msra.mxu0 0.0
    %906 = vmatprep.subr.mxu0 0.0
    %907 = vmatpush2.msra.mxu0 0.0
    %908 = vmatprep.subr.mxu0 0.0
    %909 = vmatpush2.msra.mxu0 0.0
    %910 = vmatprep.subr.mxu0 0.0
    %911 = vmatpush2.msra.mxu0 0.0
    %912 = vmatprep.mubr.f32.mxu0 0.0
    %913 = vmatmul.mubr.f32.gmra.mxu0 %v843
    %v914 = vpop.f32.mrf.mxu0
    %v915 = vadd.f32 0.0, %v914
    %v916 = vpop.f32.mrf.mxu0
    %917 = vmatprep.mubr.f32.mxu0 0.0
    %918 = vmatmul.mubr.f32.gmra.mxu0 %v846
    %v919 = vpop.f32.mrf.mxu0
    %v920 = vadd.f32 0.0, %v919
    %v921 = vpop.f32.mrf.mxu0
    %922 = vdwg.mxu0
    %s923 = scalar_lea.vmem %s3, 8
    %v924 = vld [vmem:[%s923] sm:$0xff]
    %v926 = vsel %vm300, %v915, 0
    %v929 = vsel %vm300, %v920, 0
    %931 = vmatprep.subr.mxu0 0.0
    %932 = vmatpush1.msra.mxu0 0.0
    %933 = vmatprep.subr.mxu0 0.0
    %934 = vmatpush1.msra.mxu0 0.0
    %935 = vmatprep.subr.mxu0 0.0
    %936 = vmatpush1.msra.mxu0 0.0
    %937 = vmatprep.subr.mxu0 0.0
    %938 = vmatpush1.msra.mxu0 0.0
    %939 = vmatprep.subr.mxu0 0.0
    %940 = vmatpush1.msra.mxu0 0.0
    %941 = vmatprep.subr.mxu0 0.0
    %942 = vmatpush1.msra.mxu0 0.0
    %943 = vmatprep.subr.mxu0 0.0
    %944 = vmatpush1.msra.mxu0 0.0
    %945 = vmatprep.subr.mxu0 0.0
    %946 = vmatpush1.msra.mxu0 0.0
    %947 = vmatprep.subr.mxu0 0.0
    %948 = vmatpush1.msra.mxu0 0.0
    %949 = vmatprep.subr.mxu0 0.0
    %950 = vmatpush1.msra.mxu0 0.0
    %951 = vmatprep.subr.mxu0 0.0
    %952 = vmatpush1.msra.mxu0 0.0
    %953 = vmatprep.subr.mxu0 0.0
    %954 = vmatpush1.msra.mxu0 0.0
    %955 = vmatprep.subr.mxu0 0.0
    %956 = vmatpush1.msra.mxu0 0.0
    %957 = vmatprep.subr.mxu0 0.0
    %958 = vmatpush1.msra.mxu0 0.0
    %959 = vmatprep.subr.mxu0 0.0
    %960 = vmatpush1.msra.mxu0 0.0
    %961 = vmatprep.subr.mxu0 0.0
    %962 = vmatpush1.msra.mxu0 %v924
    %963 = vmatprep.subr.mxu0 0.0
    %964 = vmatpush2.msra.mxu0 0.0
    %965 = vmatprep.subr.mxu0 0.0
    %966 = vmatpush2.msra.mxu0 0.0
    %967 = vmatprep.subr.mxu0 0.0
    %968 = vmatpush2.msra.mxu0 0.0
    %969 = vmatprep.subr.mxu0 0.0
    %970 = vmatpush2.msra.mxu0 0.0
    %971 = vmatprep.subr.mxu0 0.0
    %972 = vmatpush2.msra.mxu0 0.0
    %973 = vmatprep.subr.mxu0 0.0
    %974 = vmatpush2.msra.mxu0 0.0
    %975 = vmatprep.subr.mxu0 0.0
    %976 = vmatpush2.msra.mxu0 0.0
    %977 = vmatprep.subr.mxu0 0.0
    %978 = vmatpush2.msra.mxu0 0.0
    %979 = vmatprep.subr.mxu0 0.0
    %980 = vmatpush2.msra.mxu0 0.0
    %981 = vmatprep.subr.mxu0 0.0
    %982 = vmatpush2.msra.mxu0 0.0
    %983 = vmatprep.subr.mxu0 0.0
    %984 = vmatpush2.msra.mxu0 0.0
    %985 = vmatprep.subr.mxu0 0.0
    %986 = vmatpush2.msra.mxu0 0.0
    %987 = vmatprep.subr.mxu0 0.0
    %988 = vmatpush2.msra.mxu0 0.0
    %989 = vmatprep.subr.mxu0 0.0
    %990 = vmatpush2.msra.mxu0 0.0
    %991 = vmatprep.subr.mxu0 0.0
    %992 = vmatpush2.msra.mxu0 0.0
    %993 = vmatprep.subr.mxu0 0.0
    %994 = vmatpush2.msra.mxu0 0.0
    %995 = vmatprep.mubr.f32.mxu0 0.0
    %996 = vmatmul.mubr.f32.gmra.mxu0 %v926
    %v997 = vpop.f32.mrf.mxu0
    %v998 = vadd.f32 0.0, %v997
    %v999 = vpop.f32.mrf.mxu0
    %1000 = vmatprep.mubr.f32.mxu0 0.0
    %1001 = vmatmul.mubr.f32.gmra.mxu0 %v929
    %v1002 = vpop.f32.mrf.mxu0
    %v1003 = vadd.f32 0.0, %v1002
    %v1004 = vpop.f32.mrf.mxu0
    %1005 = vdwg.mxu0
    %v1007 = vsel %vm300, %v484, 0
    %v1010 = vsel %vm300, %v489, 0
    %1012 = vmatprep.subr.mxu0 0.0
    %1013 = vmatpush1.msra.mxu0 0.0
    %1014 = vmatprep.subr.mxu0 0.0
    %1015 = vmatpush1.msra.mxu0 0.0
    %1016 = vmatprep.subr.mxu0 0.0
    %1017 = vmatpush1.msra.mxu0 0.0
    %1018 = vmatprep.subr.mxu0 0.0
    %1019 = vmatpush1.msra.mxu0 0.0
    %1020 = vmatprep.subr.mxu0 0.0
    %1021 = vmatpush1.msra.mxu0 0.0
    %1022 = vmatprep.subr.mxu0 0.0
    %1023 = vmatpush1.msra.mxu0 0.0
    %1024 = vmatprep.subr.mxu0 0.0
    %1025 = vmatpush1.msra.mxu0 0.0
    %1026 = vmatprep.subr.mxu0 0.0
    %1027 = vmatpush1.msra.mxu0 0.0
    %1028 = vmatprep.subr.mxu0 0.0
    %1029 = vmatpush1.msra.mxu0 0.0
    %1030 = vmatprep.subr.mxu0 0.0
    %1031 = vmatpush1.msra.mxu0 0.0
    %1032 = vmatprep.subr.mxu0 0.0
    %1033 = vmatpush1.msra.mxu0 0.0
    %1034 = vmatprep.subr.mxu0 0.0
    %1035 = vmatpush1.msra.mxu0 0.0
    %1036 = vmatprep.subr.mxu0 0.0
    %1037 = vmatpush1.msra.mxu0 0.0
    %1038 = vmatprep.subr.mxu0 0.0
    %1039 = vmatpush1.msra.mxu0 0.0
    %1040 = vmatprep.subr.mxu0 0.0
    %1041 = vmatpush1.msra.mxu0 0.0
    %1042 = vmatprep.subr.mxu0 0.0
    %1043 = vmatpush1.msra.mxu0 %v492
    %1044 = vmatprep.subr.mxu0 0.0
    %1045 = vmatpush2.msra.mxu0 0.0
    %1046 = vmatprep.subr.mxu0 0.0
    %1047 = vmatpush2.msra.mxu0 0.0
    %1048 = vmatprep.subr.mxu0 0.0
    %1049 = vmatpush2.msra.mxu0 0.0
    %1050 = vmatprep.subr.mxu0 0.0
    %1051 = vmatpush2.msra.mxu0 0.0
    %1052 = vmatprep.subr.mxu0 0.0
    %1053 = vmatpush2.msra.mxu0 0.0
    %1054 = vmatprep.subr.mxu0 0.0
    %1055 = vmatpush2.msra.mxu0 0.0
    %1056 = vmatprep.subr.mxu0 0.0
    %1057 = vmatpush2.msra.mxu0 0.0
    %1058 = vmatprep.subr.mxu0 0.0
    %1059 = vmatpush2.msra.mxu0 0.0
    %1060 = vmatprep.subr.mxu0 0.0
    %1061 = vmatpush2.msra.mxu0 0.0
    %1062 = vmatprep.subr.mxu0 0.0
    %1063 = vmatpush2.msra.mxu0 0.0
    %1064 = vmatprep.subr.mxu0 0.0
    %1065 = vmatpush2.msra.mxu0 0.0
    %1066 = vmatprep.subr.mxu0 0.0
    %1067 = vmatpush2.msra.mxu0 0.0
    %1068 = vmatprep.subr.mxu0 0.0
    %1069 = vmatpush2.msra.mxu0 0.0
    %1070 = vmatprep.subr.mxu0 0.0
    %1071 = vmatpush2.msra.mxu0 0.0
    %1072 = vmatprep.subr.mxu0 0.0
    %1073 = vmatpush2.msra.mxu0 0.0
    %1074 = vmatprep.subr.mxu0 0.0
    %1075 = vmatpush2.msra.mxu0 0.0
    %1076 = vmatprep.mubr.f32.mxu0 0.0
    %1077 = vmatmul.mubr.f32.gmra.mxu0 %v1007
    %v1078 = vpop.f32.mrf.mxu0
    %v1079 = vadd.f32 %v998, %v1078
    %v1080 = vpop.f32.mrf.mxu0
    %1081 = vmatprep.mubr.f32.mxu0 0.0
    %1082 = vmatmul.mubr.f32.gmra.mxu0 %v1010
    %v1083 = vpop.f32.mrf.mxu0
    %v1084 = vadd.f32 %v1003, %v1083
    %v1085 = vpop.f32.mrf.mxu0
    %1086 = vdwg.mxu0
    %s1087 = scalar_lea.vmem %s2, 64
    %v1088 = vld [vmem:[%s1087] sm:$0xff]
    %v1089 = vld [vmem:[%s1087 + $0x8] sm:$0xff]
    %v1090 = vld [vmem:[%s1087 + $0x10] sm:$0xff]
    %v1091 = vld [vmem:[%s1087 + $0x18] sm:$0xff]
    %1092 = vmatprep.subr.mxu0 0.0
    %1093 = vmatpush1.msra.mxu0 0.0
    %1094 = vmatprep.subr.mxu0 0.0
    %1095 = vmatpush1.msra.mxu0 0.0
    %1096 = vmatprep.subr.mxu0 0.0
    %1097 = vmatpush1.msra.mxu0 0.0
    %1098 = vmatprep.subr.mxu0 0.0
    %1099 = vmatpush1.msra.mxu0 0.0
    %1100 = vmatprep.subr.mxu0 0.0
    %1101 = vmatpush1.msra.mxu0 0.0
    %1102 = vmatprep.subr.mxu0 0.0
    %1103 = vmatpush1.msra.mxu0 0.0
    %1104 = vmatprep.subr.mxu0 0.0
    %1105 = vmatpush1.msra.mxu0 0.0
    %1106 = vmatprep.subr.mxu0 0.0
    %1107 = vmatpush1.msra.mxu0 0.0
    %1108 = vmatprep.subr.mxu0 0.0
    %1109 = vmatpush1.msra.mxu0 0.0
    %1110 = vmatprep.subr.mxu0 0.0
    %1111 = vmatpush1.msra.mxu0 0.0
    %1112 = vmatprep.subr.mxu0 0.0
    %1113 = vmatpush1.msra.mxu0 0.0
    %1114 = vmatprep.subr.mxu0 0.0
    %1115 = vmatpush1.msra.mxu0 0.0
    %1116 = vmatprep.subr.mxu0 0.0
    %1117 = vmatpush1.msra.mxu0 %v1091
    %1118 = vmatprep.subr.mxu0 0.0
    %1119 = vmatpush1.msra.mxu0 %v1090
    %1120 = vmatprep.subr.mxu0 0.0
    %1121 = vmatpush1.msra.mxu0 %v1089
    %1122 = vmatprep.subr.mxu0 0.0
    %1123 = vmatpush1.msra.mxu0 %v1088
    %1124 = vmatprep.subr.mxu0 0.0
    %1125 = vmatpush2.msra.mxu0 0.0
    %1126 = vmatprep.subr.mxu0 0.0
    %1127 = vmatpush2.msra.mxu0 0.0
    %1128 = vmatprep.subr.mxu0 0.0
    %1129 = vmatpush2.msra.mxu0 0.0
    %1130 = vmatprep.subr.mxu0 0.0
    %1131 = vmatpush2.msra.mxu0 0.0
    %1132 = vmatprep.subr.mxu0 0.0
    %1133 = vmatpush2.msra.mxu0 0.0
    %1134 = vmatprep.subr.mxu0 0.0
    %1135 = vmatpush2.msra.mxu0 0.0
    %1136 = vmatprep.subr.mxu0 0.0
    %1137 = vmatpush2.msra.mxu0 0.0
    %1138 = vmatprep.subr.mxu0 0.0
    %1139 = vmatpush2.msra.mxu0 0.0
    %1140 = vmatprep.subr.mxu0 0.0
    %1141 = vmatpush2.msra.mxu0 0.0
    %1142 = vmatprep.subr.mxu0 0.0
    %1143 = vmatpush2.msra.mxu0 0.0
    %1144 = vmatprep.subr.mxu0 0.0
    %1145 = vmatpush2.msra.mxu0 0.0
    %1146 = vmatprep.subr.mxu0 0.0
    %1147 = vmatpush2.msra.mxu0 0.0
    %1148 = vmatprep.subr.mxu0 0.0
    %1149 = vmatpush2.msra.mxu0 0.0
    %1150 = vmatprep.subr.mxu0 0.0
    %1151 = vmatpush2.msra.mxu0 0.0
    %1152 = vmatprep.subr.mxu0 0.0
    %1153 = vmatpush2.msra.mxu0 0.0
    %1154 = vmatprep.subr.mxu0 0.0
    %1155 = vmatpush2.msra.mxu0 0.0
    %1156 = vmatprep.mubr.f32.mxu0 0.0
    %1157 = vmatmul.mubr.f32.gmra.mxu0 %v54
    %v1158 = vpop.f32.mrf.mxu0
    %v1159 = vadd.f32 0.0, %v1158
    %v1160 = vpop.f32.mrf.mxu0
    %1161 = vmatprep.mubr.f32.mxu0 0.0
    %1162 = vmatmul.mubr.f32.gmra.mxu0 %v57
    %v1163 = vpop.f32.mrf.mxu0
    %v1164 = vadd.f32 0.0, %v1163
    %v1165 = vpop.f32.mrf.mxu0
    %1166 = vdwg.mxu0
    %s1167 = scalar_lea.vmem %s2, 192
    %v1168 = vld [vmem:[%s1167] sm:$0xff]
    %v1169 = vld [vmem:[%s1167 + $0x8] sm:$0xff]
    %v1170 = vld [vmem:[%s1167 + $0x10] sm:$0xff]
    %v1171 = vld [vmem:[%s1167 + $0x18] sm:$0xff]
    %1172 = vmatprep.subr.mxu0 0.0
    %1173 = vmatpush1.msra.mxu0 0.0
    %1174 = vmatprep.subr.mxu0 0.0
    %1175 = vmatpush1.msra.mxu0 0.0
    %1176 = vmatprep.subr.mxu0 0.0
    %1177 = vmatpush1.msra.mxu0 0.0
    %1178 = vmatprep.subr.mxu0 0.0
    %1179 = vmatpush1.msra.mxu0 0.0
    %1180 = vmatprep.subr.mxu0 0.0
    %1181 = vmatpush1.msra.mxu0 0.0
    %1182 = vmatprep.subr.mxu0 0.0
    %1183 = vmatpush1.msra.mxu0 0.0
    %1184 = vmatprep.subr.mxu0 0.0
    %1185 = vmatpush1.msra.mxu0 0.0
    %1186 = vmatprep.subr.mxu0 0.0
    %1187 = vmatpush1.msra.mxu0 0.0
    %1188 = vmatprep.subr.mxu0 0.0
    %1189 = vmatpush1.msra.mxu0 0.0
    %1190 = vmatprep.subr.mxu0 0.0
    %1191 = vmatpush1.msra.mxu0 0.0
    %1192 = vmatprep.subr.mxu0 0.0
    %1193 = vmatpush1.msra.mxu0 0.0
    %1194 = vmatprep.subr.mxu0 0.0
    %1195 = vmatpush1.msra.mxu0 0.0
    %1196 = vmatprep.subr.mxu0 0.0
    %1197 = vmatpush1.msra.mxu0 %v1171
    %1198 = vmatprep.subr.mxu0 0.0
    %1199 = vmatpush1.msra.mxu0 %v1170
    %1200 = vmatprep.subr.mxu0 0.0
    %1201 = vmatpush1.msra.mxu0 %v1169
    %1202 = vmatprep.subr.mxu0 0.0
    %1203 = vmatpush1.msra.mxu0 %v1168
    %1204 = vmatprep.subr.mxu0 0.0
    %1205 = vmatpush2.msra.mxu0 0.0
    %1206 = vmatprep.subr.mxu0 0.0
    %1207 = vmatpush2.msra.mxu0 0.0
    %1208 = vmatprep.subr.mxu0 0.0
    %1209 = vmatpush2.msra.mxu0 0.0
    %1210 = vmatprep.subr.mxu0 0.0
    %1211 = vmatpush2.msra.mxu0 0.0
    %1212 = vmatprep.subr.mxu0 0.0
    %1213 = vmatpush2.msra.mxu0 0.0
    %1214 = vmatprep.subr.mxu0 0.0
    %1215 = vmatpush2.msra.mxu0 0.0
    %1216 = vmatprep.subr.mxu0 0.0
    %1217 = vmatpush2.msra.mxu0 0.0
    %1218 = vmatprep.subr.mxu0 0.0
    %1219 = vmatpush2.msra.mxu0 0.0
    %1220 = vmatprep.subr.mxu0 0.0
    %1221 = vmatpush2.msra.mxu0 0.0
    %1222 = vmatprep.subr.mxu0 0.0
    %1223 = vmatpush2.msra.mxu0 0.0
    %1224 = vmatprep.subr.mxu0 0.0
    %1225 = vmatpush2.msra.mxu0 0.0
    %1226 = vmatprep.subr.mxu0 0.0
    %1227 = vmatpush2.msra.mxu0 0.0
    %1228 = vmatprep.subr.mxu0 0.0
    %1229 = vmatpush2.msra.mxu0 0.0
    %1230 = vmatprep.subr.mxu0 0.0
    %1231 = vmatpush2.msra.mxu0 0.0
    %1232 = vmatprep.subr.mxu0 0.0
    %1233 = vmatpush2.msra.mxu0 0.0
    %1234 = vmatprep.subr.mxu0 0.0
    %1235 = vmatpush2.msra.mxu0 0.0
    %1236 = vmatprep.mubr.f32.mxu0 0.0
    %1237 = vmatmul.mubr.f32.gmra.mxu0 %v140
    %v1238 = vpop.f32.mrf.mxu0
    %v1239 = vadd.f32 0.0, %v1238
    %v1240 = vpop.f32.mrf.mxu0
    %1241 = vmatprep.mubr.f32.mxu0 0.0
    %1242 = vmatmul.mubr.f32.gmra.mxu0 %v143
    %v1243 = vpop.f32.mrf.mxu0
    %v1244 = vadd.f32 0.0, %v1243
    %v1245 = vpop.f32.mrf.mxu0
    %1246 = vdwg.mxu0
    %s1247 = scalar_lea.vmem %s2, 320
    %v1248 = vld [vmem:[%s1247] sm:$0xff]
    %v1249 = vld [vmem:[%s1247 + $0x8] sm:$0xff]
    %v1250 = vld [vmem:[%s1247 + $0x10] sm:$0xff]
    %v1251 = vld [vmem:[%s1247 + $0x18] sm:$0xff]
    %1252 = vmatprep.subr.mxu0 0.0
    %1253 = vmatpush1.msra.mxu0 0.0
    %1254 = vmatprep.subr.mxu0 0.0
    %1255 = vmatpush1.msra.mxu0 0.0
    %1256 = vmatprep.subr.mxu0 0.0
    %1257 = vmatpush1.msra.mxu0 0.0
    %1258 = vmatprep.subr.mxu0 0.0
    %1259 = vmatpush1.msra.mxu0 0.0
    %1260 = vmatprep.subr.mxu0 0.0
    %1261 = vmatpush1.msra.mxu0 0.0
    %1262 = vmatprep.subr.mxu0 0.0
    %1263 = vmatpush1.msra.mxu0 0.0
    %1264 = vmatprep.subr.mxu0 0.0
    %1265 = vmatpush1.msra.mxu0 0.0
    %1266 = vmatprep.subr.mxu0 0.0
    %1267 = vmatpush1.msra.mxu0 0.0
    %1268 = vmatprep.subr.mxu0 0.0
    %1269 = vmatpush1.msra.mxu0 0.0
    %1270 = vmatprep.subr.mxu0 0.0
    %1271 = vmatpush1.msra.mxu0 0.0
    %1272 = vmatprep.subr.mxu0 0.0
    %1273 = vmatpush1.msra.mxu0 0.0
    %1274 = vmatprep.subr.mxu0 0.0
    %1275 = vmatpush1.msra.mxu0 0.0
    %1276 = vmatprep.subr.mxu0 0.0
    %1277 = vmatpush1.msra.mxu0 %v1251
    %1278 = vmatprep.subr.mxu0 0.0
    %1279 = vmatpush1.msra.mxu0 %v1250
    %1280 = vmatprep.subr.mxu0 0.0
    %1281 = vmatpush1.msra.mxu0 %v1249
    %1282 = vmatprep.subr.mxu0 0.0
    %1283 = vmatpush1.msra.mxu0 %v1248
    %1284 = vmatprep.subr.mxu0 0.0
    %1285 = vmatpush2.msra.mxu0 0.0
    %1286 = vmatprep.subr.mxu0 0.0
    %1287 = vmatpush2.msra.mxu0 0.0
    %1288 = vmatprep.subr.mxu0 0.0
    %1289 = vmatpush2.msra.mxu0 0.0
    %1290 = vmatprep.subr.mxu0 0.0
    %1291 = vmatpush2.msra.mxu0 0.0
    %1292 = vmatprep.subr.mxu0 0.0
    %1293 = vmatpush2.msra.mxu0 0.0
    %1294 = vmatprep.subr.mxu0 0.0
    %1295 = vmatpush2.msra.mxu0 0.0
    %1296 = vmatprep.subr.mxu0 0.0
    %1297 = vmatpush2.msra.mxu0 0.0
    %1298 = vmatprep.subr.mxu0 0.0
    %1299 = vmatpush2.msra.mxu0 0.0
    %1300 = vmatprep.subr.mxu0 0.0
    %1301 = vmatpush2.msra.mxu0 0.0
    %1302 = vmatprep.subr.mxu0 0.0
    %1303 = vmatpush2.msra.mxu0 0.0
    %1304 = vmatprep.subr.mxu0 0.0
    %1305 = vmatpush2.msra.mxu0 0.0
    %1306 = vmatprep.subr.mxu0 0.0
    %1307 = vmatpush2.msra.mxu0 0.0
    %1308 = vmatprep.subr.mxu0 0.0
    %1309 = vmatpush2.msra.mxu0 0.0
    %1310 = vmatprep.subr.mxu0 0.0
    %1311 = vmatpush2.msra.mxu0 0.0
    %1312 = vmatprep.subr.mxu0 0.0
    %1313 = vmatpush2.msra.mxu0 0.0
    %1314 = vmatprep.subr.mxu0 0.0
    %1315 = vmatpush2.msra.mxu0 0.0
    %1316 = vmatprep.mubr.f32.mxu0 0.0
    %1317 = vmatmul.mubr.f32.gmra.mxu0 %v140
    %v1318 = vpop.f32.mrf.mxu0
    %v1319 = vadd.f32 0.0, %v1318
    %v1320 = vpop.f32.mrf.mxu0
    %1321 = vmatprep.mubr.f32.mxu0 0.0
    %1322 = vmatmul.mubr.f32.gmra.mxu0 %v143
    %v1323 = vpop.f32.mrf.mxu0
    %v1324 = vadd.f32 0.0, %v1323
    %v1325 = vpop.f32.mrf.mxu0
    %1326 = vdwg.mxu0
    %v1328 = vsel %vm300, %v1159, 0
    %v1331 = vsel %vm300, %v1164, 0
    %v1334 = vsel %vm300, %v1239, 0
    %v1337 = vsel %vm300, %v1244, 0
    %1339 = vmatprep.subr.mxu0 0.0
    %1340 = vmatpush1.xpose.msra.mxu0 0.0
    %1341 = vmatprep.subr.mxu0 0.0
    %1342 = vmatpush1.xpose.msra.mxu0 0.0
    %1343 = vmatprep.subr.mxu0 0.0
    %1344 = vmatpush1.xpose.msra.mxu0 0.0
    %1345 = vmatprep.subr.mxu0 0.0
    %1346 = vmatpush1.xpose.msra.mxu0 0.0
    %1347 = vmatprep.subr.mxu0 0.0
    %1348 = vmatpush1.xpose.msra.mxu0 0.0
    %1349 = vmatprep.subr.mxu0 0.0
    %1350 = vmatpush1.xpose.msra.mxu0 0.0
    %1351 = vmatprep.subr.mxu0 0.0
    %1352 = vmatpush1.xpose.msra.mxu0 0.0
    %1353 = vmatprep.subr.mxu0 0.0
    %1354 = vmatpush1.xpose.msra.mxu0 0.0
    %1355 = vmatprep.subr.mxu0 0.0
    %1356 = vmatpush1.xpose.msra.mxu0 0.0
    %1357 = vmatprep.subr.mxu0 0.0
    %1358 = vmatpush1.xpose.msra.mxu0 0.0
    %1359 = vmatprep.subr.mxu0 0.0
    %1360 = vmatpush1.xpose.msra.mxu0 0.0
    %1361 = vmatprep.subr.mxu0 0.0
    %1362 = vmatpush1.xpose.msra.mxu0 0.0
    %1363 = vmatprep.subr.mxu0 0.0
    %1364 = vmatpush1.xpose.msra.mxu0 0.0
    %1365 = vmatprep.subr.mxu0 0.0
    %1366 = vmatpush1.xpose.msra.mxu0 0.0
    %1367 = vmatprep.subr.mxu0 0.0
    %1368 = vmatpush1.xpose.msra.mxu0 %v1337
    %1369 = vmatprep.subr.mxu0 0.0
    %1370 = vmatpush1.xpose.msra.mxu0 %v1334
    %1371 = vmatprep.subr.mxu0 0.0
    %1372 = vmatpush2.xpose.msra.mxu0 0.0
    %1373 = vmatprep.subr.mxu0 0.0
    %1374 = vmatpush2.xpose.msra.mxu0 0.0
    %1375 = vmatprep.subr.mxu0 0.0
    %1376 = vmatpush2.xpose.msra.mxu0 0.0
    %1377 = vmatprep.subr.mxu0 0.0
    %1378 = vmatpush2.xpose.msra.mxu0 0.0
    %1379 = vmatprep.subr.mxu0 0.0
    %1380 = vmatpush2.xpose.msra.mxu0 0.0
    %1381 = vmatprep.subr.mxu0 0.0
    %1382 = vmatpush2.xpose.msra.mxu0 0.0
    %1383 = vmatprep.subr.mxu0 0.0
    %1384 = vmatpush2.xpose.msra.mxu0 0.0
    %1385 = vmatprep.subr.mxu0 0.0
    %1386 = vmatpush2.xpose.msra.mxu0 0.0
    %1387 = vmatprep.subr.mxu0 0.0
    %1388 = vmatpush2.xpose.msra.mxu0 0.0
    %1389 = vmatprep.subr.mxu0 0.0
    %1390 = vmatpush2.xpose.msra.mxu0 0.0
    %1391 = vmatprep.subr.mxu0 0.0
    %1392 = vmatpush2.xpose.msra.mxu0 0.0
    %1393 = vmatprep.subr.mxu0 0.0
    %1394 = vmatpush2.xpose.msra.mxu0 0.0
    %1395 = vmatprep.subr.mxu0 0.0
    %1396 = vmatpush2.xpose.msra.mxu0 0.0
    %1397 = vmatprep.subr.mxu0 0.0
    %1398 = vmatpush2.xpose.msra.mxu0 0.0
    %1399 = vmatprep.subr.mxu0 0.0
    %1400 = vmatpush2.xpose.msra.mxu0 0.0
    %1401 = vmatprep.subr.mxu0 0.0
    %1402 = vmatpush2.xpose.msra.mxu0 0.0
    %1403 = vmatprep.mubr.f32.mxu0 0.0
    %1404 = vmatmul.mubr.f32.gmra.mxu0 %v1328
    %v1405 = vpop.f32.mrf.mxu0
    %v1406 = vadd.f32 %v22, %v1405
    %v1407 = vpop.f32.mrf.mxu0
    %1408 = vmatprep.mubr.f32.mxu0 0.0
    %1409 = vmatmul.mubr.f32.gmra.mxu0 %v1331
    %v1410 = vpop.f32.mrf.mxu0
    %v1411 = vadd.f32 %v23, %v1410
    %v1412 = vpop.f32.mrf.mxu0
    %1413 = vdwg.mxu0
    %v1414 = vsel %vm388, %v1406, -inf
    %1415 = vmax.xlane.f32.xlu0 %v1414
    %v1416 = vpop.xlane.xlu0 %1415
    %v1417 = vsel %vm388, %v1411, -inf
    %1418 = vmax.xlane.f32.xlu0 %v1417
    %v1419 = vpop.xlane.xlu0 %1418
    %v1420 = vsub.f32 %v1406, %v1416
    %v1421 = vsub.f32 %v1411, %v1419
    %v1422 = vmul.f32 %v1420, 1.442695
    %v1423 = vpow.pop %v1422
    %v1424 = vmul.f32 %v1421, 1.442695
    %v1425 = vpow.pop %v1424
    %v1426 = vsel %vm388, %v1423, 0.0
    %1427 = vadd.xlane.f32.xlu0 %v1426
    %v1428 = vpop.xlane.xlu0 %1427
    %v1429 = vsel %vm388, %v1425, 0.0
    %1430 = vadd.xlane.f32.xlu0 %v1429
    %v1431 = vpop.xlane.xlu0 %1430
    %v1432 = vrcp.pop %v1428
    %v1433 = vmul.f32 %v1423, %v1432
    %v1434 = vrcp.pop %v1431
    %v1435 = vmul.f32 %v1425, %v1434
    %v1437 = vsel %vm388, %v1433, 0
    %v1440 = vsel %vm388, %v1435, 0
    %1442 = vmatprep.subr.mxu0 0.0
    %1443 = vmatpush1.msra.mxu0 0.0
    %1444 = vmatprep.subr.mxu0 0.0
    %1445 = vmatpush1.msra.mxu0 0.0
    %1446 = vmatprep.subr.mxu0 0.0
    %1447 = vmatpush1.msra.mxu0 0.0
    %1448 = vmatprep.subr.mxu0 0.0
    %1449 = vmatpush1.msra.mxu0 0.0
    %1450 = vmatprep.subr.mxu0 0.0
    %1451 = vmatpush1.msra.mxu0 0.0
    %1452 = vmatprep.subr.mxu0 0.0
    %1453 = vmatpush1.msra.mxu0 0.0
    %1454 = vmatprep.subr.mxu0 0.0
    %1455 = vmatpush1.msra.mxu0 0.0
    %1456 = vmatprep.subr.mxu0 0.0
    %1457 = vmatpush1.msra.mxu0 0.0
    %1458 = vmatprep.subr.mxu0 0.0
    %1459 = vmatpush1.msra.mxu0 0.0
    %1460 = vmatprep.subr.mxu0 0.0
    %1461 = vmatpush1.msra.mxu0 0.0
    %1462 = vmatprep.subr.mxu0 0.0
    %1463 = vmatpush1.msra.mxu0 0.0
    %1464 = vmatprep.subr.mxu0 0.0
    %1465 = vmatpush1.msra.mxu0 0.0
    %1466 = vmatprep.subr.mxu0 0.0
    %1467 = vmatpush1.msra.mxu0 0.0
    %1468 = vmatprep.subr.mxu0 0.0
    %1469 = vmatpush1.msra.mxu0 0.0
    %1470 = vmatprep.subr.mxu0 0.0
    %1471 = vmatpush1.msra.mxu0 %v1324
    %1472 = vmatprep.subr.mxu0 0.0
    %1473 = vmatpush1.msra.mxu0 %v1319
    %1474 = vmatprep.subr.mxu0 0.0
    %1475 = vmatpush2.msra.mxu0 0.0
    %1476 = vmatprep.subr.mxu0 0.0
    %1477 = vmatpush2.msra.mxu0 0.0
    %1478 = vmatprep.subr.mxu0 0.0
    %1479 = vmatpush2.msra.mxu0 0.0
    %1480 = vmatprep.subr.mxu0 0.0
    %1481 = vmatpush2.msra.mxu0 0.0
    %1482 = vmatprep.subr.mxu0 0.0
    %1483 = vmatpush2.msra.mxu0 0.0
    %1484 = vmatprep.subr.mxu0 0.0
    %1485 = vmatpush2.msra.mxu0 0.0
    %1486 = vmatprep.subr.mxu0 0.0
    %1487 = vmatpush2.msra.mxu0 0.0
    %1488 = vmatprep.subr.mxu0 0.0
    %1489 = vmatpush2.msra.mxu0 0.0
    %1490 = vmatprep.subr.mxu0 0.0
    %1491 = vmatpush2.msra.mxu0 0.0
    %1492 = vmatprep.subr.mxu0 0.0
    %1493 = vmatpush2.msra.mxu0 0.0
    %1494 = vmatprep.subr.mxu0 0.0
    %1495 = vmatpush2.msra.mxu0 0.0
    %1496 = vmatprep.subr.mxu0 0.0
    %1497 = vmatpush2.msra.mxu0 0.0
    %1498 = vmatprep.subr.mxu0 0.0
    %1499 = vmatpush2.msra.mxu0 0.0
    %1500 = vmatprep.subr.mxu0 0.0
    %1501 = vmatpush2.msra.mxu0 0.0
    %1502 = vmatprep.subr.mxu0 0.0
    %1503 = vmatpush2.msra.mxu0 0.0
    %1504 = vmatprep.subr.mxu0 0.0
    %1505 = vmatpush2.msra.mxu0 0.0
    %1506 = vmatprep.mubr.f32.mxu0 0.0
    %1507 = vmatmul.mubr.f32.gmra.mxu0 %v1437
    %v1508 = vpop.f32.mrf.mxu0
    %v1509 = vadd.f32 0.0, %v1508
    %v1510 = vpop.f32.mrf.mxu0
    %1511 = vmatprep.mubr.f32.mxu0 0.0
    %1512 = vmatmul.mubr.f32.gmra.mxu0 %v1440
    %v1513 = vpop.f32.mrf.mxu0
    %v1514 = vadd.f32 0.0, %v1513
    %v1515 = vpop.f32.mrf.mxu0
    %1516 = vdwg.mxu0
    %s1517 = scalar_lea.vmem %s3, 16
    %v1518 = vld [vmem:[%s1517] sm:$0xff]
    %v1520 = vsel %vm300, %v1509, 0
    %v1523 = vsel %vm300, %v1514, 0
    %1525 = vmatprep.subr.mxu0 0.0
    %1526 = vmatpush1.msra.mxu0 0.0
    %1527 = vmatprep.subr.mxu0 0.0
    %1528 = vmatpush1.msra.mxu0 0.0
    %1529 = vmatprep.subr.mxu0 0.0
    %1530 = vmatpush1.msra.mxu0 0.0
    %1531 = vmatprep.subr.mxu0 0.0
    %1532 = vmatpush1.msra.mxu0 0.0
    %1533 = vmatprep.subr.mxu0 0.0
    %1534 = vmatpush1.msra.mxu0 0.0
    %1535 = vmatprep.subr.mxu0 0.0
    %1536 = vmatpush1.msra.mxu0 0.0
    %1537 = vmatprep.subr.mxu0 0.0
    %1538 = vmatpush1.msra.mxu0 0.0
    %1539 = vmatprep.subr.mxu0 0.0
    %1540 = vmatpush1.msra.mxu0 0.0
    %1541 = vmatprep.subr.mxu0 0.0
    %1542 = vmatpush1.msra.mxu0 0.0
    %1543 = vmatprep.subr.mxu0 0.0
    %1544 = vmatpush1.msra.mxu0 0.0
    %1545 = vmatprep.subr.mxu0 0.0
    %1546 = vmatpush1.msra.mxu0 0.0
    %1547 = vmatprep.subr.mxu0 0.0
    %1548 = vmatpush1.msra.mxu0 0.0
    %1549 = vmatprep.subr.mxu0 0.0
    %1550 = vmatpush1.msra.mxu0 0.0
    %1551 = vmatprep.subr.mxu0 0.0
    %1552 = vmatpush1.msra.mxu0 0.0
    %1553 = vmatprep.subr.mxu0 0.0
    %1554 = vmatpush1.msra.mxu0 0.0
    %1555 = vmatprep.subr.mxu0 0.0
    %1556 = vmatpush1.msra.mxu0 %v1518
    %1557 = vmatprep.subr.mxu0 0.0
    %1558 = vmatpush2.msra.mxu0 0.0
    %1559 = vmatprep.subr.mxu0 0.0
    %1560 = vmatpush2.msra.mxu0 0.0
    %1561 = vmatprep.subr.mxu0 0.0
    %1562 = vmatpush2.msra.mxu0 0.0
    %1563 = vmatprep.subr.mxu0 0.0
    %1564 = vmatpush2.msra.mxu0 0.0
    %1565 = vmatprep.subr.mxu0 0.0
    %1566 = vmatpush2.msra.mxu0 0.0
    %1567 = vmatprep.subr.mxu0 0.0
    %1568 = vmatpush2.msra.mxu0 0.0
    %1569 = vmatprep.subr.mxu0 0.0
    %1570 = vmatpush2.msra.mxu0 0.0
    %1571 = vmatprep.subr.mxu0 0.0
    %1572 = vmatpush2.msra.mxu0 0.0
    %1573 = vmatprep.subr.mxu0 0.0
    %1574 = vmatpush2.msra.mxu0 0.0
    %1575 = vmatprep.subr.mxu0 0.0
    %1576 = vmatpush2.msra.mxu0 0.0
    %1577 = vmatprep.subr.mxu0 0.0
    %1578 = vmatpush2.msra.mxu0 0.0
    %1579 = vmatprep.subr.mxu0 0.0
    %1580 = vmatpush2.msra.mxu0 0.0
    %1581 = vmatprep.subr.mxu0 0.0
    %1582 = vmatpush2.msra.mxu0 0.0
    %1583 = vmatprep.subr.mxu0 0.0
    %1584 = vmatpush2.msra.mxu0 0.0
    %1585 = vmatprep.subr.mxu0 0.0
    %1586 = vmatpush2.msra.mxu0 0.0
    %1587 = vmatprep.subr.mxu0 0.0
    %1588 = vmatpush2.msra.mxu0 0.0
    %1589 = vmatprep.mubr.f32.mxu0 0.0
    %1590 = vmatmul.mubr.f32.gmra.mxu0 %v1520
    %v1591 = vpop.f32.mrf.mxu0
    %v1592 = vadd.f32 0.0, %v1591
    %v1593 = vpop.f32.mrf.mxu0
    %1594 = vmatprep.mubr.f32.mxu0 0.0
    %1595 = vmatmul.mubr.f32.gmra.mxu0 %v1523
    %v1596 = vpop.f32.mrf.mxu0
    %v1597 = vadd.f32 0.0, %v1596
    %v1598 = vpop.f32.mrf.mxu0
    %1599 = vdwg.mxu0
    %v1600 = vadd.f32 %v1079, %v1592
    %v1601 = vadd.f32 %v1084, %v1597
    %s1602 = scalar_lea.vmem %s2, 96
    %v1603 = vld [vmem:[%s1602] sm:$0xff]
    %v1604 = vld [vmem:[%s1602 + $0x8] sm:$0xff]
    %v1605 = vld [vmem:[%s1602 + $0x10] sm:$0xff]
    %v1606 = vld [vmem:[%s1602 + $0x18] sm:$0xff]
    %1607 = vmatprep.subr.mxu0 0.0
    %1608 = vmatpush1.msra.mxu0 0.0
    %1609 = vmatprep.subr.mxu0 0.0
    %1610 = vmatpush1.msra.mxu0 0.0
    %1611 = vmatprep.subr.mxu0 0.0
    %1612 = vmatpush1.msra.mxu0 0.0
    %1613 = vmatprep.subr.mxu0 0.0
    %1614 = vmatpush1.msra.mxu0 0.0
    %1615 = vmatprep.subr.mxu0 0.0
    %1616 = vmatpush1.msra.mxu0 0.0
    %1617 = vmatprep.subr.mxu0 0.0
    %1618 = vmatpush1.msra.mxu0 0.0
    %1619 = vmatprep.subr.mxu0 0.0
    %1620 = vmatpush1.msra.mxu0 0.0
    %1621 = vmatprep.subr.mxu0 0.0
    %1622 = vmatpush1.msra.mxu0 0.0
    %1623 = vmatprep.subr.mxu0 0.0
    %1624 = vmatpush1.msra.mxu0 0.0
    %1625 = vmatprep.subr.mxu0 0.0
    %1626 = vmatpush1.msra.mxu0 0.0
    %1627 = vmatprep.subr.mxu0 0.0
    %1628 = vmatpush1.msra.mxu0 0.0
    %1629 = vmatprep.subr.mxu0 0.0
    %1630 = vmatpush1.msra.mxu0 0.0
    %1631 = vmatprep.subr.mxu0 0.0
    %1632 = vmatpush1.msra.mxu0 %v1606
    %1633 = vmatprep.subr.mxu0 0.0
    %1634 = vmatpush1.msra.mxu0 %v1605
    %1635 = vmatprep.subr.mxu0 0.0
    %1636 = vmatpush1.msra.mxu0 %v1604
    %1637 = vmatprep.subr.mxu0 0.0
    %1638 = vmatpush1.msra.mxu0 %v1603
    %1639 = vmatprep.subr.mxu0 0.0
    %1640 = vmatpush2.msra.mxu0 0.0
    %1641 = vmatprep.subr.mxu0 0.0
    %1642 = vmatpush2.msra.mxu0 0.0
    %1643 = vmatprep.subr.mxu0 0.0
    %1644 = vmatpush2.msra.mxu0 0.0
    %1645 = vmatprep.subr.mxu0 0.0
    %1646 = vmatpush2.msra.mxu0 0.0
    %1647 = vmatprep.subr.mxu0 0.0
    %1648 = vmatpush2.msra.mxu0 0.0
    %1649 = vmatprep.subr.mxu0 0.0
    %1650 = vmatpush2.msra.mxu0 0.0
    %1651 = vmatprep.subr.mxu0 0.0
    %1652 = vmatpush2.msra.mxu0 0.0
    %1653 = vmatprep.subr.mxu0 0.0
    %1654 = vmatpush2.msra.mxu0 0.0
    %1655 = vmatprep.subr.mxu0 0.0
    %1656 = vmatpush2.msra.mxu0 0.0
    %1657 = vmatprep.subr.mxu0 0.0
    %1658 = vmatpush2.msra.mxu0 0.0
    %1659 = vmatprep.subr.mxu0 0.0
    %1660 = vmatpush2.msra.mxu0 0.0
    %1661 = vmatprep.subr.mxu0 0.0
    %1662 = vmatpush2.msra.mxu0 0.0
    %1663 = vmatprep.subr.mxu0 0.0
    %1664 = vmatpush2.msra.mxu0 0.0
    %1665 = vmatprep.subr.mxu0 0.0
    %1666 = vmatpush2.msra.mxu0 0.0
    %1667 = vmatprep.subr.mxu0 0.0
    %1668 = vmatpush2.msra.mxu0 0.0
    %1669 = vmatprep.subr.mxu0 0.0
    %1670 = vmatpush2.msra.mxu0 0.0
    %1671 = vmatprep.mubr.f32.mxu0 0.0
    %1672 = vmatmul.mubr.f32.gmra.mxu0 %v54
    %v1673 = vpop.f32.mrf.mxu0
    %v1674 = vadd.f32 0.0, %v1673
    %v1675 = vpop.f32.mrf.mxu0
    %1676 = vmatprep.mubr.f32.mxu0 0.0
    %1677 = vmatmul.mubr.f32.gmra.mxu0 %v57
    %v1678 = vpop.f32.mrf.mxu0
    %v1679 = vadd.f32 0.0, %v1678
    %v1680 = vpop.f32.mrf.mxu0
    %1681 = vdwg.mxu0
    %s1682 = scalar_lea.vmem %s2, 224
    %v1683 = vld [vmem:[%s1682] sm:$0xff]
    %v1684 = vld [vmem:[%s1682 + $0x8] sm:$0xff]
    %v1685 = vld [vmem:[%s1682 + $0x10] sm:$0xff]
    %v1686 = vld [vmem:[%s1682 + $0x18] sm:$0xff]
    %1687 = vmatprep.subr.mxu0 0.0
    %1688 = vmatpush1.msra.mxu0 0.0
    %1689 = vmatprep.subr.mxu0 0.0
    %1690 = vmatpush1.msra.mxu0 0.0
    %1691 = vmatprep.subr.mxu0 0.0
    %1692 = vmatpush1.msra.mxu0 0.0
    %1693 = vmatprep.subr.mxu0 0.0
    %1694 = vmatpush1.msra.mxu0 0.0
    %1695 = vmatprep.subr.mxu0 0.0
    %1696 = vmatpush1.msra.mxu0 0.0
    %1697 = vmatprep.subr.mxu0 0.0
    %1698 = vmatpush1.msra.mxu0 0.0
    %1699 = vmatprep.subr.mxu0 0.0
    %1700 = vmatpush1.msra.mxu0 0.0
    %1701 = vmatprep.subr.mxu0 0.0
    %1702 = vmatpush1.msra.mxu0 0.0
    %1703 = vmatprep.subr.mxu0 0.0
    %1704 = vmatpush1.msra.mxu0 0.0
    %1705 = vmatprep.subr.mxu0 0.0
    %1706 = vmatpush1.msra.mxu0 0.0
    %1707 = vmatprep.subr.mxu0 0.0
    %1708 = vmatpush1.msra.mxu0 0.0
    %1709 = vmatprep.subr.mxu0 0.0
    %1710 = vmatpush1.msra.mxu0 0.0
    %1711 = vmatprep.subr.mxu0 0.0
    %1712 = vmatpush1.msra.mxu0 %v1686
    %1713 = vmatprep.subr.mxu0 0.0
    %1714 = vmatpush1.msra.mxu0 %v1685
    %1715 = vmatprep.subr.mxu0 0.0
    %1716 = vmatpush1.msra.mxu0 %v1684
    %1717 = vmatprep.subr.mxu0 0.0
    %1718 = vmatpush1.msra.mxu0 %v1683
    %1719 = vmatprep.subr.mxu0 0.0
    %1720 = vmatpush2.msra.mxu0 0.0
    %1721 = vmatprep.subr.mxu0 0.0
    %1722 = vmatpush2.msra.mxu0 0.0
    %1723 = vmatprep.subr.mxu0 0.0
    %1724 = vmatpush2.msra.mxu0 0.0
    %1725 = vmatprep.subr.mxu0 0.0
    %1726 = vmatpush2.msra.mxu0 0.0
    %1727 = vmatprep.subr.mxu0 0.0
    %1728 = vmatpush2.msra.mxu0 0.0
    %1729 = vmatprep.subr.mxu0 0.0
    %1730 = vmatpush2.msra.mxu0 0.0
    %1731 = vmatprep.subr.mxu0 0.0
    %1732 = vmatpush2.msra.mxu0 0.0
    %1733 = vmatprep.subr.mxu0 0.0
    %1734 = vmatpush2.msra.mxu0 0.0
    %1735 = vmatprep.subr.mxu0 0.0
    %1736 = vmatpush2.msra.mxu0 0.0
    %1737 = vmatprep.subr.mxu0 0.0
    %1738 = vmatpush2.msra.mxu0 0.0
    %1739 = vmatprep.subr.mxu0 0.0
    %1740 = vmatpush2.msra.mxu0 0.0
    %1741 = vmatprep.subr.mxu0 0.0
    %1742 = vmatpush2.msra.mxu0 0.0
    %1743 = vmatprep.subr.mxu0 0.0
    %1744 = vmatpush2.msra.mxu0 0.0
    %1745 = vmatprep.subr.mxu0 0.0
    %1746 = vmatpush2.msra.mxu0 0.0
    %1747 = vmatprep.subr.mxu0 0.0
    %1748 = vmatpush2.msra.mxu0 0.0
    %1749 = vmatprep.subr.mxu0 0.0
    %1750 = vmatpush2.msra.mxu0 0.0
    %1751 = vmatprep.mubr.f32.mxu0 0.0
    %1752 = vmatmul.mubr.f32.gmra.mxu0 %v140
    %v1753 = vpop.f32.mrf.mxu0
    %v1754 = vadd.f32 0.0, %v1753
    %v1755 = vpop.f32.mrf.mxu0
    %1756 = vmatprep.mubr.f32.mxu0 0.0
    %1757 = vmatmul.mubr.f32.gmra.mxu0 %v143
    %v1758 = vpop.f32.mrf.mxu0
    %v1759 = vadd.f32 0.0, %v1758
    %v1760 = vpop.f32.mrf.mxu0
    %1761 = vdwg.mxu0
    %s1762 = scalar_lea.vmem %s2, 352
    %v1763 = vld [vmem:[%s1762] sm:$0xff]
    %v1764 = vld [vmem:[%s1762 + $0x8] sm:$0xff]
    %v1765 = vld [vmem:[%s1762 + $0x10] sm:$0xff]
    %v1766 = vld [vmem:[%s1762 + $0x18] sm:$0xff]
    %1767 = vmatprep.subr.mxu0 0.0
    %1768 = vmatpush1.msra.mxu0 0.0
    %1769 = vmatprep.subr.mxu0 0.0
    %1770 = vmatpush1.msra.mxu0 0.0
    %1771 = vmatprep.subr.mxu0 0.0
    %1772 = vmatpush1.msra.mxu0 0.0
    %1773 = vmatprep.subr.mxu0 0.0
    %1774 = vmatpush1.msra.mxu0 0.0
    %1775 = vmatprep.subr.mxu0 0.0
    %1776 = vmatpush1.msra.mxu0 0.0
    %1777 = vmatprep.subr.mxu0 0.0
    %1778 = vmatpush1.msra.mxu0 0.0
    %1779 = vmatprep.subr.mxu0 0.0
    %1780 = vmatpush1.msra.mxu0 0.0
    %1781 = vmatprep.subr.mxu0 0.0
    %1782 = vmatpush1.msra.mxu0 0.0
    %1783 = vmatprep.subr.mxu0 0.0
    %1784 = vmatpush1.msra.mxu0 0.0
    %1785 = vmatprep.subr.mxu0 0.0
    %1786 = vmatpush1.msra.mxu0 0.0
    %1787 = vmatprep.subr.mxu0 0.0
    %1788 = vmatpush1.msra.mxu0 0.0
    %1789 = vmatprep.subr.mxu0 0.0
    %1790 = vmatpush1.msra.mxu0 0.0
    %1791 = vmatprep.subr.mxu0 0.0
    %1792 = vmatpush1.msra.mxu0 %v1766
    %1793 = vmatprep.subr.mxu0 0.0
    %1794 = vmatpush1.msra.mxu0 %v1765
    %1795 = vmatprep.subr.mxu0 0.0
    %1796 = vmatpush1.msra.mxu0 %v1764
    %1797 = vmatprep.subr.mxu0 0.0
    %1798 = vmatpush1.msra.mxu0 %v1763
    %1799 = vmatprep.subr.mxu0 0.0
    %1800 = vmatpush2.msra.mxu0 0.0
    %1801 = vmatprep.subr.mxu0 0.0
    %1802 = vmatpush2.msra.mxu0 0.0
    %1803 = vmatprep.subr.mxu0 0.0
    %1804 = vmatpush2.msra.mxu0 0.0
    %1805 = vmatprep.subr.mxu0 0.0
    %1806 = vmatpush2.msra.mxu0 0.0
    %1807 = vmatprep.subr.mxu0 0.0
    %1808 = vmatpush2.msra.mxu0 0.0
    %1809 = vmatprep.subr.mxu0 0.0
    %1810 = vmatpush2.msra.mxu0 0.0
    %1811 = vmatprep.subr.mxu0 0.0
    %1812 = vmatpush2.msra.mxu0 0.0
    %1813 = vmatprep.subr.mxu0 0.0
    %1814 = vmatpush2.msra.mxu0 0.0
    %1815 = vmatprep.subr.mxu0 0.0
    %1816 = vmatpush2.msra.mxu0 0.0
    %1817 = vmatprep.subr.mxu0 0.0
    %1818 = vmatpush2.msra.mxu0 0.0
    %1819 = vmatprep.subr.mxu0 0.0
    %1820 = vmatpush2.msra.mxu0 0.0
    %1821 = vmatprep.subr.mxu0 0.0
    %1822 = vmatpush2.msra.mxu0 0.0
    %1823 = vmatprep.subr.mxu0 0.0
    %1824 = vmatpush2.msra.mxu0 0.0
    %1825 = vmatprep.subr.mxu0 0.0
    %1826 = vmatpush2.msra.mxu0 0.0
    %1827 = vmatprep.subr.mxu0 0.0
    %1828 = vmatpush2.msra.mxu0 0.0
    %1829 = vmatprep.subr.mxu0 0.0
    %1830 = vmatpush2.msra.mxu0 0.0
    %1831 = vmatprep.mubr.f32.mxu0 0.0
    %1832 = vmatmul.mubr.f32.gmra.mxu0 %v140
    %v1833 = vpop.f32.mrf.mxu0
    %v1834 = vadd.f32 0.0, %v1833
    %v1835 = vpop.f32.mrf.mxu0
    %1836 = vmatprep.mubr.f32.mxu0 0.0
    %1837 = vmatmul.mubr.f32.gmra.mxu0 %v143
    %v1838 = vpop.f32.mrf.mxu0
    %v1839 = vadd.f32 0.0, %v1838
    %v1840 = vpop.f32.mrf.mxu0
    %1841 = vdwg.mxu0
    %v1843 = vsel %vm300, %v1674, 0
    %v1846 = vsel %vm300, %v1679, 0
    %v1849 = vsel %vm300, %v1754, 0
    %v1852 = vsel %vm300, %v1759, 0
    %1854 = vmatprep.subr.mxu0 0.0
    %1855 = vmatpush1.xpose.msra.mxu0 0.0
    %1856 = vmatprep.subr.mxu0 0.0
    %1857 = vmatpush1.xpose.msra.mxu0 0.0
    %1858 = vmatprep.subr.mxu0 0.0
    %1859 = vmatpush1.xpose.msra.mxu0 0.0
    %1860 = vmatprep.subr.mxu0 0.0
    %1861 = vmatpush1.xpose.msra.mxu0 0.0
    %1862 = vmatprep.subr.mxu0 0.0
    %1863 = vmatpush1.xpose.msra.mxu0 0.0
    %1864 = vmatprep.subr.mxu0 0.0
    %1865 = vmatpush1.xpose.msra.mxu0 0.0
    %1866 = vmatprep.subr.mxu0 0.0
    %1867 = vmatpush1.xpose.msra.mxu0 0.0
    %1868 = vmatprep.subr.mxu0 0.0
    %1869 = vmatpush1.xpose.msra.mxu0 0.0
    %1870 = vmatprep.subr.mxu0 0.0
    %1871 = vmatpush1.xpose.msra.mxu0 0.0
    %1872 = vmatprep.subr.mxu0 0.0
    %1873 = vmatpush1.xpose.msra.mxu0 0.0
    %1874 = vmatprep.subr.mxu0 0.0
    %1875 = vmatpush1.xpose.msra.mxu0 0.0
    %1876 = vmatprep.subr.mxu0 0.0
    %1877 = vmatpush1.xpose.msra.mxu0 0.0
    %1878 = vmatprep.subr.mxu0 0.0
    %1879 = vmatpush1.xpose.msra.mxu0 0.0
    %1880 = vmatprep.subr.mxu0 0.0
    %1881 = vmatpush1.xpose.msra.mxu0 0.0
    %1882 = vmatprep.subr.mxu0 0.0
    %1883 = vmatpush1.xpose.msra.mxu0 %v1852
    %1884 = vmatprep.subr.mxu0 0.0
    %1885 = vmatpush1.xpose.msra.mxu0 %v1849
    %1886 = vmatprep.subr.mxu0 0.0
    %1887 = vmatpush2.xpose.msra.mxu0 0.0
    %1888 = vmatprep.subr.mxu0 0.0
    %1889 = vmatpush2.xpose.msra.mxu0 0.0
    %1890 = vmatprep.subr.mxu0 0.0
    %1891 = vmatpush2.xpose.msra.mxu0 0.0
    %1892 = vmatprep.subr.mxu0 0.0
    %1893 = vmatpush2.xpose.msra.mxu0 0.0
    %1894 = vmatprep.subr.mxu0 0.0
    %1895 = vmatpush2.xpose.msra.mxu0 0.0
    %1896 = vmatprep.subr.mxu0 0.0
    %1897 = vmatpush2.xpose.msra.mxu0 0.0
    %1898 = vmatprep.subr.mxu0 0.0
    %1899 = vmatpush2.xpose.msra.mxu0 0.0
    %1900 = vmatprep.subr.mxu0 0.0
    %1901 = vmatpush2.xpose.msra.mxu0 0.0
    %1902 = vmatprep.subr.mxu0 0.0
    %1903 = vmatpush2.xpose.msra.mxu0 0.0
    %1904 = vmatprep.subr.mxu0 0.0
    %1905 = vmatpush2.xpose.msra.mxu0 0.0
    %1906 = vmatprep.subr.mxu0 0.0
    %1907 = vmatpush2.xpose.msra.mxu0 0.0
    %1908 = vmatprep.subr.mxu0 0.0
    %1909 = vmatpush2.xpose.msra.mxu0 0.0
    %1910 = vmatprep.subr.mxu0 0.0
    %1911 = vmatpush2.xpose.msra.mxu0 0.0
    %1912 = vmatprep.subr.mxu0 0.0
    %1913 = vmatpush2.xpose.msra.mxu0 0.0
    %1914 = vmatprep.subr.mxu0 0.0
    %1915 = vmatpush2.xpose.msra.mxu0 0.0
    %1916 = vmatprep.subr.mxu0 0.0
    %1917 = vmatpush2.xpose.msra.mxu0 0.0
    %1918 = vmatprep.mubr.f32.mxu0 0.0
    %1919 = vmatmul.mubr.f32.gmra.mxu0 %v1843
    %v1920 = vpop.f32.mrf.mxu0
    %v1921 = vadd.f32 %v22, %v1920
    %v1922 = vpop.f32.mrf.mxu0
    %1923 = vmatprep.mubr.f32.mxu0 0.0
    %1924 = vmatmul.mubr.f32.gmra.mxu0 %v1846
    %v1925 = vpop.f32.mrf.mxu0
    %v1926 = vadd.f32 %v23, %v1925
    %v1927 = vpop.f32.mrf.mxu0
    %1928 = vdwg.mxu0
    %v1929 = vsel %vm388, %v1921, -inf
    %1930 = vmax.xlane.f32.xlu0 %v1929
    %v1931 = vpop.xlane.xlu0 %1930
    %v1932 = vsel %vm388, %v1926, -inf
    %1933 = vmax.xlane.f32.xlu0 %v1932
    %v1934 = vpop.xlane.xlu0 %1933
    %v1935 = vsub.f32 %v1921, %v1931
    %v1936 = vsub.f32 %v1926, %v1934
    %v1937 = vmul.f32 %v1935, 1.442695
    %v1938 = vpow.pop %v1937
    %v1939 = vmul.f32 %v1936, 1.442695
    %v1940 = vpow.pop %v1939
    %v1941 = vsel %vm388, %v1938, 0.0
    %1942 = vadd.xlane.f32.xlu0 %v1941
    %v1943 = vpop.xlane.xlu0 %1942
    %v1944 = vsel %vm388, %v1940, 0.0
    %1945 = vadd.xlane.f32.xlu0 %v1944
    %v1946 = vpop.xlane.xlu0 %1945
    %v1947 = vrcp.pop %v1943
    %v1948 = vmul.f32 %v1938, %v1947
    %v1949 = vrcp.pop %v1946
    %v1950 = vmul.f32 %v1940, %v1949
    %v1952 = vsel %vm388, %v1948, 0
    %v1955 = vsel %vm388, %v1950, 0
    %1957 = vmatprep.subr.mxu0 0.0
    %1958 = vmatpush1.msra.mxu0 0.0
    %1959 = vmatprep.subr.mxu0 0.0
    %1960 = vmatpush1.msra.mxu0 0.0
    %1961 = vmatprep.subr.mxu0 0.0
    %1962 = vmatpush1.msra.mxu0 0.0
    %1963 = vmatprep.subr.mxu0 0.0
    %1964 = vmatpush1.msra.mxu0 0.0
    %1965 = vmatprep.subr.mxu0 0.0
    %1966 = vmatpush1.msra.mxu0 0.0
    %1967 = vmatprep.subr.mxu0 0.0
    %1968 = vmatpush1.msra.mxu0 0.0
    %1969 = vmatprep.subr.mxu0 0.0
    %1970 = vmatpush1.msra.mxu0 0.0
    %1971 = vmatprep.subr.mxu0 0.0
    %1972 = vmatpush1.msra.mxu0 0.0
    %1973 = vmatprep.subr.mxu0 0.0
    %1974 = vmatpush1.msra.mxu0 0.0
    %1975 = vmatprep.subr.mxu0 0.0
    %1976 = vmatpush1.msra.mxu0 0.0
    %1977 = vmatprep.subr.mxu0 0.0
    %1978 = vmatpush1.msra.mxu0 0.0
    %1979 = vmatprep.subr.mxu0 0.0
    %1980 = vmatpush1.msra.mxu0 0.0
    %1981 = vmatprep.subr.mxu0 0.0
    %1982 = vmatpush1.msra.mxu0 0.0
    %1983 = vmatprep.subr.mxu0 0.0
    %1984 = vmatpush1.msra.mxu0 0.0
    %1985 = vmatprep.subr.mxu0 0.0
    %1986 = vmatpush1.msra.mxu0 %v1839
    %1987 = vmatprep.subr.mxu0 0.0
    %1988 = vmatpush1.msra.mxu0 %v1834
    %1989 = vmatprep.subr.mxu0 0.0
    %1990 = vmatpush2.msra.mxu0 0.0
    %1991 = vmatprep.subr.mxu0 0.0
    %1992 = vmatpush2.msra.mxu0 0.0
    %1993 = vmatprep.subr.mxu0 0.0
    %1994 = vmatpush2.msra.mxu0 0.0
    %1995 = vmatprep.subr.mxu0 0.0
    %1996 = vmatpush2.msra.mxu0 0.0
    %1997 = vmatprep.subr.mxu0 0.0
    %1998 = vmatpush2.msra.mxu0 0.0
    %1999 = vmatprep.subr.mxu0 0.0
    %2000 = vmatpush2.msra.mxu0 0.0
    %2001 = vmatprep.subr.mxu0 0.0
    %2002 = vmatpush2.msra.mxu0 0.0
    %2003 = vmatprep.subr.mxu0 0.0
    %2004 = vmatpush2.msra.mxu0 0.0
    %2005 = vmatprep.subr.mxu0 0.0
    %2006 = vmatpush2.msra.mxu0 0.0
    %2007 = vmatprep.subr.mxu0 0.0
    %2008 = vmatpush2.msra.mxu0 0.0
    %2009 = vmatprep.subr.mxu0 0.0
    %2010 = vmatpush2.msra.mxu0 0.0
    %2011 = vmatprep.subr.mxu0 0.0
    %2012 = vmatpush2.msra.mxu0 0.0
    %2013 = vmatprep.subr.mxu0 0.0
    %2014 = vmatpush2.msra.mxu0 0.0
    %2015 = vmatprep.subr.mxu0 0.0
    %2016 = vmatpush2.msra.mxu0 0.0
    %2017 = vmatprep.subr.mxu0 0.0
    %2018 = vmatpush2.msra.mxu0 0.0
    %2019 = vmatprep.subr.mxu0 0.0
    %2020 = vmatpush2.msra.mxu0 0.0
    %2021 = vmatprep.mubr.f32.mxu0 0.0
    %2022 = vmatmul.mubr.f32.gmra.mxu0 %v1952
    %v2023 = vpop.f32.mrf.mxu0
    %v2024 = vadd.f32 0.0, %v2023
    %v2025 = vpop.f32.mrf.mxu0
    %2026 = vmatprep.mubr.f32.mxu0 0.0
    %2027 = vmatmul.mubr.f32.gmra.mxu0 %v1955
    %v2028 = vpop.f32.mrf.mxu0
    %v2029 = vadd.f32 0.0, %v2028
    %v2030 = vpop.f32.mrf.mxu0
    %2031 = vdwg.mxu0
    %s2032 = scalar_lea.vmem %s3, 24
    %v2033 = vld [vmem:[%s2032] sm:$0xff]
    %v2035 = vsel %vm300, %v2024, 0
    %v2038 = vsel %vm300, %v2029, 0
    %2040 = vmatprep.subr.mxu0 0.0
    %2041 = vmatpush1.msra.mxu0 0.0
    %2042 = vmatprep.subr.mxu0 0.0
    %2043 = vmatpush1.msra.mxu0 0.0
    %2044 = vmatprep.subr.mxu0 0.0
    %2045 = vmatpush1.msra.mxu0 0.0
    %2046 = vmatprep.subr.mxu0 0.0
    %2047 = vmatpush1.msra.mxu0 0.0
    %2048 = vmatprep.subr.mxu0 0.0
    %2049 = vmatpush1.msra.mxu0 0.0
    %2050 = vmatprep.subr.mxu0 0.0
    %2051 = vmatpush1.msra.mxu0 0.0
    %2052 = vmatprep.subr.mxu0 0.0
    %2053 = vmatpush1.msra.mxu0 0.0
    %2054 = vmatprep.subr.mxu0 0.0
    %2055 = vmatpush1.msra.mxu0 0.0
    %2056 = vmatprep.subr.mxu0 0.0
    %2057 = vmatpush1.msra.mxu0 0.0
    %2058 = vmatprep.subr.mxu0 0.0
    %2059 = vmatpush1.msra.mxu0 0.0
    %2060 = vmatprep.subr.mxu0 0.0
    %2061 = vmatpush1.msra.mxu0 0.0
    %2062 = vmatprep.subr.mxu0 0.0
    %2063 = vmatpush1.msra.mxu0 0.0
    %2064 = vmatprep.subr.mxu0 0.0
    %2065 = vmatpush1.msra.mxu0 0.0
    %2066 = vmatprep.subr.mxu0 0.0
    %2067 = vmatpush1.msra.mxu0 0.0
    %2068 = vmatprep.subr.mxu0 0.0
    %2069 = vmatpush1.msra.mxu0 0.0
    %2070 = vmatprep.subr.mxu0 0.0
    %2071 = vmatpush1.msra.mxu0 %v2033
    %2072 = vmatprep.subr.mxu0 0.0
    %2073 = vmatpush2.msra.mxu0 0.0
    %2074 = vmatprep.subr.mxu0 0.0
    %2075 = vmatpush2.msra.mxu0 0.0
    %2076 = vmatprep.subr.mxu0 0.0
    %2077 = vmatpush2.msra.mxu0 0.0
    %2078 = vmatprep.subr.mxu0 0.0
    %2079 = vmatpush2.msra.mxu0 0.0
    %2080 = vmatprep.subr.mxu0 0.0
    %2081 = vmatpush2.msra.mxu0 0.0
    %2082 = vmatprep.subr.mxu0 0.0
    %2083 = vmatpush2.msra.mxu0 0.0
    %2084 = vmatprep.subr.mxu0 0.0
    %2085 = vmatpush2.msra.mxu0 0.0
    %2086 = vmatprep.subr.mxu0 0.0
    %2087 = vmatpush2.msra.mxu0 0.0
    %2088 = vmatprep.subr.mxu0 0.0
    %2089 = vmatpush2.msra.mxu0 0.0
    %2090 = vmatprep.subr.mxu0 0.0
    %2091 = vmatpush2.msra.mxu0 0.0
    %2092 = vmatprep.subr.mxu0 0.0
    %2093 = vmatpush2.msra.mxu0 0.0
    %2094 = vmatprep.subr.mxu0 0.0
    %2095 = vmatpush2.msra.mxu0 0.0
    %2096 = vmatprep.subr.mxu0 0.0
    %2097 = vmatpush2.msra.mxu0 0.0
    %2098 = vmatprep.subr.mxu0 0.0
    %2099 = vmatpush2.msra.mxu0 0.0
    %2100 = vmatprep.subr.mxu0 0.0
    %2101 = vmatpush2.msra.mxu0 0.0
    %2102 = vmatprep.subr.mxu0 0.0
    %2103 = vmatpush2.msra.mxu0 0.0
    %2104 = vmatprep.mubr.f32.mxu0 0.0
    %2105 = vmatmul.mubr.f32.gmra.mxu0 %v2035
    %v2106 = vpop.f32.mrf.mxu0
    %v2107 = vadd.f32 0.0, %v2106
    %v2108 = vpop.f32.mrf.mxu0
    %2109 = vmatprep.mubr.f32.mxu0 0.0
    %2110 = vmatmul.mubr.f32.gmra.mxu0 %v2038
    %v2111 = vpop.f32.mrf.mxu0
    %v2112 = vadd.f32 0.0, %v2111
    %v2113 = vpop.f32.mrf.mxu0
    %2114 = vdwg.mxu0
    %v2115 = vadd.f32 %v1600, %v2107
    %v2116 = vadd.f32 %v1601, %v2112
    %v2117 = vadd.f32 %v18, %v2115
    %v2118 = vadd.f32 %v19, %v2116
    %2119 = vst.msk [vmem:[#allocation2] sm:$0xff] %vm27, %v2117
    %2120 = vst.msk [vmem:[#allocation2 + $0x8] sm:$0xff] %vm27, %v2118
    // Predicated region
    $region18: #{tpu_custom_call.1} parent=1 // pred_check
      _
    $region19: #{tpu_custom_call.1} parent=1 // pred_check_branch
      %2122 = sbr.rel (0) target = $region21
    $region20: #{tpu_custom_call.1} parent=1 // pred_region
      %s2124 = ssub.s32 256, 256
      %2125 = vsyncadd [#allocation3], %s2124
      %s2126 = sshll.u32 [#allocation2], 4
      %s2127 = int_to_ptr.vmem [resolvable:$true] %s2126
      %2132 = dma.vmem_to_hbm [thread:$0]  %s2127, 256, %s4, [#allocation3], 128, 128, 8
    $region21: #{tpu_custom_call.1} parent=1 // pred_fallthru
      _
    // Predicated region
    $region22: #{tpu_custom_call.1} parent=1 // pred_check
      _
    $region23: #{tpu_custom_call.1} parent=1 // pred_check_branch
      %2134 = sbr.rel (0) target = $region25
    $region24: #{tpu_custom_call.1} parent=1 // pred_region
      %2135 = dma.done [#allocation3], 256
    $region25: #{tpu_custom_call.1} parent=1 // pred_fallthru
      _
    %2136 = vsyncpa [#allocation3], 1

</llo_original>
